<compile_context>
chip_gen: v6e
topology: v6e:2x2x1
jax: 0.10.0
libtpu: 0.0.40
codegen_flags: <defaults>
</compile_context>

<pallas_src>
import jax
import jax.numpy as jnp
from jax.experimental import pallas as pl
from jax.experimental.pallas import tpu as pltpu


# --------------------------------- kernel ---------------------------------

def make_tcn_kernel(R, T, K, embed_dim, channels, has_downsample, bias_idx, dout_pad):
    num_layers = len(channels)

    def kernel(*refs):
        it = iter(refs)
        x_ref = next(it)        # (R, Din)        bf16
        we_ref = next(it)       # (Din, E)        bf16
        bias_ref = next(it)     # (NB, Cmax)      f32 packed biases
        layer_w = []
        for l in range(num_layers):
            w1 = next(it)                                   # (K*Cin,  Cout) bf16
            w2 = next(it)                                   # (K*Cout, Cout) bf16
            wd = next(it) if has_downsample[l] else None    # (Cin,    Cout) bf16
            layer_w.append((w1, w2, wd))
        wdec_ref = next(it)     # (C_last, Dout_pad) bf16
        out_ref = next(it)      # (R, Dout_pad)

        # Per-sequence time index, hoisted once.  Each block holds whole
        # sequences and starts at a multiple of T, so t = row % T.
        row_t = jax.lax.broadcasted_iota(jnp.int32, (R, 1), 0) % T

        def bias(idx, c):
            # static row / lane slice of the packed bias table -> (1, c) f32
            return bias_ref[idx:idx + 1, 0:c]

        # embed: (R, Din) @ (Din, E)
        h = jnp.dot(x_ref[...], we_ref[...],
                    preferred_element_type=jnp.float32) + bias(bias_idx['be'], embed_dim)

        def causal_conv(inp, w_ref, b_row, dilation, cout):
            # Fold K shifted taps into one (R, K*Cin) @ (K*Cin, Cout) matmul.
            parts = []
            for k in range(K):
                s = (K - 1 - k) * dilation          # static shift for tap k
                if s == 0:
                    parts.append(inp)
                else:
                    rolled = pltpu.roll(inp, shift=s, axis=0)
                    parts.append(jnp.where(row_t >= s, rolled, 0.0))
            xcat = jnp.concatenate(parts, axis=1).astype(jnp.bfloat16)
            acc = jnp.dot(xcat, w_ref[...], preferred_element_type=jnp.float32)
            return acc + bias(b_row, cout)

        for l in range(num_layers):
            w1, w2, wd = layer_w[l]
            d = 2 ** l
            cout = channels[l]
            out1 = jnp.maximum(causal_conv(h, w1, bias_idx['b1'][l], d, cout), 0.0)
            out2 = jnp.maximum(causal_conv(out1, w2, bias_idx['b2'][l], d, cout), 0.0)
            if wd is not None:
                res = jnp.dot(h.astype(jnp.bfloat16), wd[...],
                              preferred_element_type=jnp.float32) + bias(bias_idx['bd'][l], cout)
            else:
                res = h
            h = jnp.maximum(out2 + res, 0.0)

        y = jnp.dot(h.astype(jnp.bfloat16), wdec_ref[...],
                    preferred_element_type=jnp.float32) + bias(bias_idx['bdec'], dout_pad)
        out_ref[...] = y.astype(out_ref.dtype)

    return kernel


# --------------------------------- wrapper ---------------------------------

def tcn_forward(x, packed, channels, K, has_downsample):
    B, T, Din = x.shape
    embed_dim = packed['We'].shape[1]
    dout = packed['dout']
    dout_pad = packed['Wdec'].shape[1]

    # Rows per grid step: as many whole sequences as fit ~512 rows, dividing B.
    max_bb = max(1, 512 // T)
    bb = 1
    for cand in range(min(B, max_bb), 0, -1):
        if B % cand == 0:
            bb = cand
            break
    R = bb * T

    x2 = x.reshape(B * T, Din).astype(jnp.bfloat16)

    inputs = [x2, packed['We'], packed['bias']]
    in_specs = [
        pl.BlockSpec((R, Din), lambda i: (i, 0)),
        pl.BlockSpec(packed['We'].shape, lambda i: (0, 0)),
        pl.BlockSpec(packed['bias'].shape, lambda i: (0, 0)),
    ]

    def full_spec(arr):
        return pl.BlockSpec(arr.shape, lambda i: (0, 0))

    for l in range(len(channels)):
        lw = packed['layers'][l]
        inputs.append(lw['W1']); in_specs.append(full_spec(lw['W1']))
        inputs.append(lw['W2']); in_specs.append(full_spec(lw['W2']))
        if has_downsample[l]:
            inputs.append(lw['Wd']); in_specs.append(full_spec(lw['Wd']))
    inputs.append(packed['Wdec']); in_specs.append(full_spec(packed['Wdec']))

    kernel = make_tcn_kernel(R, T, K, embed_dim, tuple(channels),
                             tuple(has_downsample), packed['bias_idx'], dout_pad)

    out = pl.pallas_call(
        kernel,
        out_shape=jax.ShapeDtypeStruct((B * T, dout_pad), jnp.float32),
        grid=(B // bb,),
        in_specs=in_specs,
        out_specs=pl.BlockSpec((R, dout_pad), lambda i: (i, 0)),
        compiler_params=pltpu.CompilerParams(
            dimension_semantics=("parallel",),           # batch axis -> both v7x TCs
            vmem_limit_bytes=32 * 1024 * 1024),
    )(*inputs)
    return out.reshape(B, T, dout_pad)[..., :dout]


# ----------------------- parameter setup (glue, plain JAX) -----------------------

def round_bf16(a):
    return a.astype(jnp.bfloat16).astype(jnp.float32)


def weight_norm_conv(v, g):
    # PyTorch weight_norm with dim=0: w = g * v / ||v|| per output channel.
    norm = jnp.sqrt(jnp.sum(v * v, axis=(1, 2), keepdims=True))
    return v / norm * g[:, None, None]


def init_params(key, input_dim, embed_dim, num_channels, output_dim, K):
    keys = iter(jax.random.split(key, 64))

    def nrm(shape, scale=0.1):
        return round_bf16(scale * jax.random.normal(next(keys), shape, jnp.float32))

    params = {'We': nrm((input_dim, embed_dim)),
              'be': nrm((embed_dim,), 0.01)}
    layers = []
    cin = embed_dim
    for cout in num_channels:
        v1 = 0.1 * jax.random.normal(next(keys), (cout, cin, K), jnp.float32)
        g1 = 1.0 + 0.05 * jax.random.normal(next(keys), (cout,), jnp.float32)
        v2 = 0.1 * jax.random.normal(next(keys), (cout, cout, K), jnp.float32)
        g2 = 1.0 + 0.05 * jax.random.normal(next(keys), (cout,), jnp.float32)
        lp = {
            # (K, Cin, Cout): tap-major layout shared by kernel and reference.
            'W1': round_bf16(jnp.transpose(weight_norm_conv(v1, g1), (2, 1, 0))),
            'b1': nrm((cout,), 0.01),
            'W2': round_bf16(jnp.transpose(weight_norm_conv(v2, g2), (2, 1, 0))),
            'b2': nrm((cout,), 0.01),
        }
        if cin != cout:   # 1x1 downsample conv on the residual path
            lp['Wd'] = nrm((cin, cout))
            lp['bd'] = nrm((cout,), 0.01)
        layers.append(lp)
        cin = cout
    params['layers'] = layers
    params['Wdec'] = nrm((cin, output_dim))
    params['bdec'] = nrm((output_dim,), 0.01)
    return params


def pack_params(params, num_channels, K, has_downsample):
    """bf16 weights, reshaped conv weights, lane-padded decoder, packed biases."""
    embed_dim = params['We'].shape[1]
    dout = params['Wdec'].shape[1]
    dout_pad = ((dout + 127) // 128) * 128
    widths = [embed_dim, dout_pad] + list(num_channels)
    cmax = ((max(widths) + 127) // 128) * 128

    bias_rows = []

    def add_bias(vec):
        row = jnp.zeros((cmax,), jnp.float32).at[:vec.shape[0]].set(vec)
        bias_rows.append(row)
        return len(bias_rows) - 1

    packed = {'We': params['We'].astype(jnp.bfloat16), 'dout': dout}
    bias_idx = {'be': add_bias(params['be']), 'b1': [], 'b2': [], 'bd': []}

    layers = []
    cin = embed_dim
    for l, cout in enumerate(num_channels):
        lp = params['layers'][l]
        lw = {
            # (K, Cin, Cout) -> (K*Cin, Cout): rows are tap-major, matching the
            # kernel's lane-concatenation order of the shifted inputs.
            'W1': lp['W1'].reshape(K * cin, cout).astype(jnp.bfloat16),
            'W2': lp['W2'].reshape(K * cout, cout).astype(jnp.bfloat16),
        }
        bias_idx['b1'].append(add_bias(lp['b1']))
        bias_idx['b2'].append(add_bias(lp['b2']))
        if has_downsample[l]:
            lw['Wd'] = lp['Wd'].astype(jnp.bfloat16)
            bias_idx['bd'].append(add_bias(lp['bd']))
        else:
            bias_idx['bd'].append(None)
        layers.append(lw)
        cin = cout
    packed['layers'] = layers

    wdec = jnp.zeros((cin, dout_pad), jnp.float32).at[:, :dout].set(params['Wdec'])
    packed['Wdec'] = wdec.astype(jnp.bfloat16)
    bias_idx['bdec'] = add_bias(params['bdec'])

    packed['bias'] = jnp.stack(bias_rows, axis=0)
    packed['bias_idx'] = bias_idx
    return packed


# ----------------------------- pure-JAX reference -----------------------------

def ref_forward(x, params, num_channels, K):
    B, T, _ = x.shape
    h = x @ params['We'] + params['be']
    for l, cout in enumerate(num_channels):
        lp = params['layers'][l]
        d = 2 ** l
        p = (K - 1) * d

        def conv(inp, Wk, b):
            pad = jnp.pad(inp, ((0, 0), (p, 0), (0, 0)))
            acc = jnp.zeros((B, T, Wk.shape[2]), jnp.float32) + b
            for k in range(K):
                acc = acc + pad[:, k * d:k * d + T, :] @ Wk[k]
            return acc

        out1 = jax.nn.relu(conv(h, lp['W1'], lp['b1']))
        out2 = jax.nn.relu(conv(out1, lp['W2'], lp['b2']))
        res = h if 'Wd' not in lp else h @ lp['Wd'] + lp['bd']
        h = jax.nn.relu(out2 + res)
    return h @ params['Wdec'] + params['bdec']


if __name__ == "__main__":
    input_dim, embed_dim = 6, 32
    num_channels = [64, 64]
    output_dim = 5
    kernel_sz = 3
    B, T = 4, 32

    key = jax.random.PRNGKey(0)
    kx, kp = jax.random.split(key)
    x = jax.random.normal(kx, (B, T, input_dim), jnp.float32)
    params = init_params(kp, input_dim, embed_dim, num_channels, output_dim, kernel_sz)

    has_downsample = []
    cin = embed_dim
    for cout in num_channels:
        has_downsample.append(cin != cout)
        cin = cout

    packed = pack_params(params, num_channels, kernel_sz, has_downsample)
    out = tcn_forward(x, packed, num_channels, kernel_sz, has_downsample)
    out = jax.block_until_ready(out)

    ref = ref_forward(x, params, num_channels, kernel_sz)
    assert out.shape == (B, T, output_dim), out.shape
    err = float(jnp.max(jnp.abs(out - ref)))
    if err > 3e-2:   # bf16 matmul inputs vs f32 reference
        raise AssertionError(f"kernel/reference mismatch: max abs err {err}")
    print("KERNEL_OK")
</pallas_src>

<mosaic_0001>
module attributes {stable_mosaic.version = 11 : i64} {
  func.func @kernel(%arg0: i32, %arg1: memref<128x6xbf16, #tpu.memory_space<vmem>>, %arg2: memref<6x32xbf16, #tpu.memory_space<vmem>>, %arg3: memref<7x128xf32, #tpu.memory_space<vmem>>, %arg4: memref<96x64xbf16, #tpu.memory_space<vmem>>, %arg5: memref<192x64xbf16, #tpu.memory_space<vmem>>, %arg6: memref<32x64xbf16, #tpu.memory_space<vmem>>, %arg7: memref<192x64xbf16, #tpu.memory_space<vmem>>, %arg8: memref<192x64xbf16, #tpu.memory_space<vmem>>, %arg9: memref<64x128xbf16, #tpu.memory_space<vmem>>, %arg10: memref<128x128xf32, #tpu.memory_space<vmem>>) attributes {dimension_semantics = [#tpu.dimension_semantics<parallel>], iteration_bounds = array<i64: 1>, scalar_prefetch = 0 : i64, scratch_operands = 0 : i64, tpu.core_type = #tpu.core_type<tc>, window_params = [{transform_indices = @transform_0, window_bounds = array<i64: 128, 6>}, {pipeline_mode = #tpu.pipeline_mode<synchronous>, transform_indices = @transform_1, window_bounds = array<i64: 6, 32>}, {pipeline_mode = #tpu.pipeline_mode<synchronous>, transform_indices = @transform_2, window_bounds = array<i64: 7, 128>}, {pipeline_mode = #tpu.pipeline_mode<synchronous>, transform_indices = @transform_3, window_bounds = array<i64: 96, 64>}, {pipeline_mode = #tpu.pipeline_mode<synchronous>, transform_indices = @transform_4, window_bounds = array<i64: 192, 64>}, {pipeline_mode = #tpu.pipeline_mode<synchronous>, transform_indices = @transform_5, window_bounds = array<i64: 32, 64>}, {pipeline_mode = #tpu.pipeline_mode<synchronous>, transform_indices = @transform_6, window_bounds = array<i64: 192, 64>}, {pipeline_mode = #tpu.pipeline_mode<synchronous>, transform_indices = @transform_7, window_bounds = array<i64: 192, 64>}, {pipeline_mode = #tpu.pipeline_mode<synchronous>, transform_indices = @transform_8, window_bounds = array<i64: 64, 128>}, {transform_indices = @transform_9, window_bounds = array<i64: 128, 128>}]} {
    %0 = tpu.iota {dimensions = array<i32: 0>} : vector<128x1xi32>
    %c32_i32 = arith.constant 32 : i32
    %c0_i32 = arith.constant 0 : i32
    %1 = arith.cmpi eq, %c32_i32, %c0_i32 : i32
    %c1_i32 = arith.constant 1 : i32
    %2 = arith.select %1, %c1_i32, %c32_i32 : i32
    %3 = vector.broadcast %2 : i32 to vector<128x1xi32>
    %4 = arith.remsi %0, %3 : vector<128x1xi32>
    %c0_i32_0 = arith.constant 0 : i32
    %5 = vector.broadcast %c0_i32_0 : i32 to vector<128x1xi32>
    %6 = arith.cmpi ne, %4, %5 : vector<128x1xi32>
    %c0_i32_1 = arith.constant 0 : i32
    %7 = vector.broadcast %c0_i32_1 : i32 to vector<128x1xi32>
    %8 = arith.cmpi slt, %4, %7 : vector<128x1xi32>
    %c0_i32_2 = arith.constant 0 : i32
    %9 = arith.cmpi slt, %2, %c0_i32_2 : i32
    %10 = vector.broadcast %9 : i1 to vector<128x1xi1>
    %11 = vector.broadcast %10 : vector<128x1xi1> to vector<128x1xi1>
    %12 = arith.xori %8, %11 : vector<128x1xi1>
    %13 = arith.andi %12, %6 : vector<128x1xi1>
    %14 = vector.broadcast %2 : i32 to vector<128x1xi32>
    %15 = arith.addi %4, %14 : vector<128x1xi32>
    %16 = arith.select %13, %15, %4 : vector<128x1xi1>, vector<128x1xi32>
    %c0 = arith.constant 0 : index
    %c0_3 = arith.constant 0 : index
    %17 = vector.load %arg1[%c0, %c0_3] : memref<128x6xbf16, #tpu.memory_space<vmem>>, vector<128x6xbf16>
    %c0_4 = arith.constant 0 : index
    %c0_5 = arith.constant 0 : index
    %18 = vector.load %arg2[%c0_4, %c0_5] : memref<6x32xbf16, #tpu.memory_space<vmem>>, vector<6x32xbf16>
    %cst = arith.constant dense<0.000000e+00> : vector<128x32xf32>
    %19 = tpu.matmul %17, %18, %cst {dimension_numbers = #tpu.dot_dimension_numbers<[1], [0], [0], [1], [0, 0, 1, 1], [], []>} : vector<128x6xbf16>, vector<6x32xbf16>, vector<128x32xf32> -> vector<128x32xf32>
    %c0_6 = arith.constant 0 : index
    %c0_7 = arith.constant 0 : index
    %20 = vector.load %arg3[%c0_6, %c0_7] : memref<7x128xf32, #tpu.memory_space<vmem>>, vector<1x32xf32>
    %21 = vector.broadcast %20 : vector<1x32xf32> to vector<128x32xf32>
    %22 = arith.addf %19, %21 : vector<128x32xf32>
    %c2_i32 = arith.constant 2 : i32
    %23 = tpu.dynamic_rotate %22 by %c2_i32 dim 0 : vector<128x32xf32>, i32 -> vector<128x32xf32>
    %c2_i32_8 = arith.constant 2 : i32
    %24 = vector.broadcast %c2_i32_8 : i32 to vector<128x1xi32>
    %25 = arith.cmpi sge, %16, %24 : vector<128x1xi32>
    %cst_9 = arith.constant 0.000000e+00 : f32
    %26 = vector.shape_cast %25 : vector<128x1xi1> to vector<128x1xi1>
    %27 = vector.broadcast %26 : vector<128x1xi1> to vector<128x32xi1>
    %28 = vector.broadcast %cst_9 : f32 to vector<128x32xf32>
    %29 = arith.select %27, %23, %28 : vector<128x32xi1>, vector<128x32xf32>
    %c1_i32_10 = arith.constant 1 : i32
    %30 = tpu.dynamic_rotate %22 by %c1_i32_10 dim 0 : vector<128x32xf32>, i32 -> vector<128x32xf32>
    %c1_i32_11 = arith.constant 1 : i32
    %31 = vector.broadcast %c1_i32_11 : i32 to vector<128x1xi32>
    %32 = arith.cmpi sge, %16, %31 : vector<128x1xi32>
    %cst_12 = arith.constant 0.000000e+00 : f32
    %33 = vector.shape_cast %32 : vector<128x1xi1> to vector<128x1xi1>
    %34 = vector.broadcast %33 : vector<128x1xi1> to vector<128x32xi1>
    %35 = vector.broadcast %cst_12 : f32 to vector<128x32xf32>
    %36 = arith.select %34, %30, %35 : vector<128x32xi1>, vector<128x32xf32>
    %37 = tpu.concatenate %29, %36, %22 in 1 : vector<128x32xf32>, vector<128x32xf32>, vector<128x32xf32> -> vector<128x96xf32>
    %38 = arith.truncf %37 : vector<128x96xf32> to vector<128x96xbf16>
    %c0_13 = arith.constant 0 : index
    %c0_14 = arith.constant 0 : index
    %39 = vector.load %arg4[%c0_13, %c0_14] : memref<96x64xbf16, #tpu.memory_space<vmem>>, vector<96x64xbf16>
    %cst_15 = arith.constant dense<0.000000e+00> : vector<128x64xf32>
    %40 = tpu.matmul %38, %39, %cst_15 {dimension_numbers = #tpu.dot_dimension_numbers<[1], [0], [0], [1], [0, 0, 1, 1], [], []>} : vector<128x96xbf16>, vector<96x64xbf16>, vector<128x64xf32> -> vector<128x64xf32>
    %c1 = arith.constant 1 : index
    %c0_16 = arith.constant 0 : index
    %41 = vector.load %arg3[%c1, %c0_16] : memref<7x128xf32, #tpu.memory_space<vmem>>, vector<1x64xf32>
    %42 = vector.broadcast %41 : vector<1x64xf32> to vector<128x64xf32>
    %43 = arith.addf %40, %42 : vector<128x64xf32>
    %cst_17 = arith.constant 0.000000e+00 : f32
    %44 = vector.broadcast %cst_17 : f32 to vector<128x64xf32>
    %45 = arith.maximumf %43, %44 : vector<128x64xf32>
    %c2_i32_18 = arith.constant 2 : i32
    %46 = tpu.dynamic_rotate %45 by %c2_i32_18 dim 0 : vector<128x64xf32>, i32 -> vector<128x64xf32>
    %c2_i32_19 = arith.constant 2 : i32
    %47 = vector.broadcast %c2_i32_19 : i32 to vector<128x1xi32>
    %48 = arith.cmpi sge, %16, %47 : vector<128x1xi32>
    %cst_20 = arith.constant 0.000000e+00 : f32
    %49 = vector.shape_cast %48 : vector<128x1xi1> to vector<128x1xi1>
    %50 = vector.broadcast %49 : vector<128x1xi1> to vector<128x64xi1>
    %51 = vector.broadcast %cst_20 : f32 to vector<128x64xf32>
    %52 = arith.select %50, %46, %51 : vector<128x64xi1>, vector<128x64xf32>
    %c1_i32_21 = arith.constant 1 : i32
    %53 = tpu.dynamic_rotate %45 by %c1_i32_21 dim 0 : vector<128x64xf32>, i32 -> vector<128x64xf32>
    %c1_i32_22 = arith.constant 1 : i32
    %54 = vector.broadcast %c1_i32_22 : i32 to vector<128x1xi32>
    %55 = arith.cmpi sge, %16, %54 : vector<128x1xi32>
    %cst_23 = arith.constant 0.000000e+00 : f32
    %56 = vector.shape_cast %55 : vector<128x1xi1> to vector<128x1xi1>
    %57 = vector.broadcast %56 : vector<128x1xi1> to vector<128x64xi1>
    %58 = vector.broadcast %cst_23 : f32 to vector<128x64xf32>
    %59 = arith.select %57, %53, %58 : vector<128x64xi1>, vector<128x64xf32>
    %60 = tpu.concatenate %52, %59, %45 in 1 : vector<128x64xf32>, vector<128x64xf32>, vector<128x64xf32> -> vector<128x192xf32>
    %61 = arith.truncf %60 : vector<128x192xf32> to vector<128x192xbf16>
    %c0_24 = arith.constant 0 : index
    %c0_25 = arith.constant 0 : index
    %62 = vector.load %arg5[%c0_24, %c0_25] : memref<192x64xbf16, #tpu.memory_space<vmem>>, vector<192x64xbf16>
    %cst_26 = arith.constant dense<0.000000e+00> : vector<128x64xf32>
    %63 = tpu.matmul %61, %62, %cst_26 {dimension_numbers = #tpu.dot_dimension_numbers<[1], [0], [0], [1], [0, 0, 1, 1], [], []>} : vector<128x192xbf16>, vector<192x64xbf16>, vector<128x64xf32> -> vector<128x64xf32>
    %c2 = arith.constant 2 : index
    %c0_27 = arith.constant 0 : index
    %64 = vector.load %arg3[%c2, %c0_27] : memref<7x128xf32, #tpu.memory_space<vmem>>, vector<1x64xf32>
    %65 = vector.broadcast %64 : vector<1x64xf32> to vector<128x64xf32>
    %66 = arith.addf %63, %65 : vector<128x64xf32>
    %cst_28 = arith.constant 0.000000e+00 : f32
    %67 = vector.broadcast %cst_28 : f32 to vector<128x64xf32>
    %68 = arith.maximumf %66, %67 : vector<128x64xf32>
    %69 = arith.truncf %22 : vector<128x32xf32> to vector<128x32xbf16>
    %c0_29 = arith.constant 0 : index
    %c0_30 = arith.constant 0 : index
    %70 = vector.load %arg6[%c0_29, %c0_30] : memref<32x64xbf16, #tpu.memory_space<vmem>>, vector<32x64xbf16>
    %cst_31 = arith.constant dense<0.000000e+00> : vector<128x64xf32>
    %71 = tpu.matmul %69, %70, %cst_31 {dimension_numbers = #tpu.dot_dimension_numbers<[1], [0], [0], [1], [0, 0, 1, 1], [], []>} : vector<128x32xbf16>, vector<32x64xbf16>, vector<128x64xf32> -> vector<128x64xf32>
    %c3 = arith.constant 3 : index
    %c0_32 = arith.constant 0 : index
    %72 = vector.load %arg3[%c3, %c0_32] : memref<7x128xf32, #tpu.memory_space<vmem>>, vector<1x64xf32>
    %73 = vector.broadcast %72 : vector<1x64xf32> to vector<128x64xf32>
    %74 = arith.addf %71, %73 : vector<128x64xf32>
    %75 = arith.addf %68, %74 : vector<128x64xf32>
    %cst_33 = arith.constant 0.000000e+00 : f32
    %76 = vector.broadcast %cst_33 : f32 to vector<128x64xf32>
    %77 = arith.maximumf %75, %76 : vector<128x64xf32>
    %c4_i32 = arith.constant 4 : i32
    %78 = tpu.dynamic_rotate %77 by %c4_i32 dim 0 : vector<128x64xf32>, i32 -> vector<128x64xf32>
    %c4_i32_34 = arith.constant 4 : i32
    %79 = vector.broadcast %c4_i32_34 : i32 to vector<128x1xi32>
    %80 = arith.cmpi sge, %16, %79 : vector<128x1xi32>
    %cst_35 = arith.constant 0.000000e+00 : f32
    %81 = vector.shape_cast %80 : vector<128x1xi1> to vector<128x1xi1>
    %82 = vector.broadcast %81 : vector<128x1xi1> to vector<128x64xi1>
    %83 = vector.broadcast %cst_35 : f32 to vector<128x64xf32>
    %84 = arith.select %82, %78, %83 : vector<128x64xi1>, vector<128x64xf32>
    %c2_i32_36 = arith.constant 2 : i32
    %85 = tpu.dynamic_rotate %77 by %c2_i32_36 dim 0 : vector<128x64xf32>, i32 -> vector<128x64xf32>
    %c2_i32_37 = arith.constant 2 : i32
    %86 = vector.broadcast %c2_i32_37 : i32 to vector<128x1xi32>
    %87 = arith.cmpi sge, %16, %86 : vector<128x1xi32>
    %cst_38 = arith.constant 0.000000e+00 : f32
    %88 = vector.shape_cast %87 : vector<128x1xi1> to vector<128x1xi1>
    %89 = vector.broadcast %88 : vector<128x1xi1> to vector<128x64xi1>
    %90 = vector.broadcast %cst_38 : f32 to vector<128x64xf32>
    %91 = arith.select %89, %85, %90 : vector<128x64xi1>, vector<128x64xf32>
    %92 = tpu.concatenate %84, %91, %77 in 1 : vector<128x64xf32>, vector<128x64xf32>, vector<128x64xf32> -> vector<128x192xf32>
    %93 = arith.truncf %92 : vector<128x192xf32> to vector<128x192xbf16>
    %c0_39 = arith.constant 0 : index
    %c0_40 = arith.constant 0 : index
    %94 = vector.load %arg7[%c0_39, %c0_40] : memref<192x64xbf16, #tpu.memory_space<vmem>>, vector<192x64xbf16>
    %cst_41 = arith.constant dense<0.000000e+00> : vector<128x64xf32>
    %95 = tpu.matmul %93, %94, %cst_41 {dimension_numbers = #tpu.dot_dimension_numbers<[1], [0], [0], [1], [0, 0, 1, 1], [], []>} : vector<128x192xbf16>, vector<192x64xbf16>, vector<128x64xf32> -> vector<128x64xf32>
    %c4 = arith.constant 4 : index
    %c0_42 = arith.constant 0 : index
    %96 = vector.load %arg3[%c4, %c0_42] : memref<7x128xf32, #tpu.memory_space<vmem>>, vector<1x64xf32>
    %97 = vector.broadcast %96 : vector<1x64xf32> to vector<128x64xf32>
    %98 = arith.addf %95, %97 : vector<128x64xf32>
    %cst_43 = arith.constant 0.000000e+00 : f32
    %99 = vector.broadcast %cst_43 : f32 to vector<128x64xf32>
    %100 = arith.maximumf %98, %99 : vector<128x64xf32>
    %c4_i32_44 = arith.constant 4 : i32
    %101 = tpu.dynamic_rotate %100 by %c4_i32_44 dim 0 : vector<128x64xf32>, i32 -> vector<128x64xf32>
    %c4_i32_45 = arith.constant 4 : i32
    %102 = vector.broadcast %c4_i32_45 : i32 to vector<128x1xi32>
    %103 = arith.cmpi sge, %16, %102 : vector<128x1xi32>
    %cst_46 = arith.constant 0.000000e+00 : f32
    %104 = vector.shape_cast %103 : vector<128x1xi1> to vector<128x1xi1>
    %105 = vector.broadcast %104 : vector<128x1xi1> to vector<128x64xi1>
    %106 = vector.broadcast %cst_46 : f32 to vector<128x64xf32>
    %107 = arith.select %105, %101, %106 : vector<128x64xi1>, vector<128x64xf32>
    %c2_i32_47 = arith.constant 2 : i32
    %108 = tpu.dynamic_rotate %100 by %c2_i32_47 dim 0 : vector<128x64xf32>, i32 -> vector<128x64xf32>
    %c2_i32_48 = arith.constant 2 : i32
    %109 = vector.broadcast %c2_i32_48 : i32 to vector<128x1xi32>
    %110 = arith.cmpi sge, %16, %109 : vector<128x1xi32>
    %cst_49 = arith.constant 0.000000e+00 : f32
    %111 = vector.shape_cast %110 : vector<128x1xi1> to vector<128x1xi1>
    %112 = vector.broadcast %111 : vector<128x1xi1> to vector<128x64xi1>
    %113 = vector.broadcast %cst_49 : f32 to vector<128x64xf32>
    %114 = arith.select %112, %108, %113 : vector<128x64xi1>, vector<128x64xf32>
    %115 = tpu.concatenate %107, %114, %100 in 1 : vector<128x64xf32>, vector<128x64xf32>, vector<128x64xf32> -> vector<128x192xf32>
    %116 = arith.truncf %115 : vector<128x192xf32> to vector<128x192xbf16>
    %c0_50 = arith.constant 0 : index
    %c0_51 = arith.constant 0 : index
    %117 = vector.load %arg8[%c0_50, %c0_51] : memref<192x64xbf16, #tpu.memory_space<vmem>>, vector<192x64xbf16>
    %cst_52 = arith.constant dense<0.000000e+00> : vector<128x64xf32>
    %118 = tpu.matmul %116, %117, %cst_52 {dimension_numbers = #tpu.dot_dimension_numbers<[1], [0], [0], [1], [0, 0, 1, 1], [], []>} : vector<128x192xbf16>, vector<192x64xbf16>, vector<128x64xf32> -> vector<128x64xf32>
    %c5 = arith.constant 5 : index
    %c0_53 = arith.constant 0 : index
    %119 = vector.load %arg3[%c5, %c0_53] : memref<7x128xf32, #tpu.memory_space<vmem>>, vector<1x64xf32>
    %120 = vector.broadcast %119 : vector<1x64xf32> to vector<128x64xf32>
    %121 = arith.addf %118, %120 : vector<128x64xf32>
    %cst_54 = arith.constant 0.000000e+00 : f32
    %122 = vector.broadcast %cst_54 : f32 to vector<128x64xf32>
    %123 = arith.maximumf %121, %122 : vector<128x64xf32>
    %124 = arith.addf %123, %77 : vector<128x64xf32>
    %cst_55 = arith.constant 0.000000e+00 : f32
    %125 = vector.broadcast %cst_55 : f32 to vector<128x64xf32>
    %126 = arith.maximumf %124, %125 : vector<128x64xf32>
    %127 = arith.truncf %126 : vector<128x64xf32> to vector<128x64xbf16>
    %c0_56 = arith.constant 0 : index
    %c0_57 = arith.constant 0 : index
    %128 = vector.load %arg9[%c0_56, %c0_57] : memref<64x128xbf16, #tpu.memory_space<vmem>>, vector<64x128xbf16>
    %cst_58 = arith.constant dense<0.000000e+00> : vector<128x128xf32>
    %129 = tpu.matmul %127, %128, %cst_58 {dimension_numbers = #tpu.dot_dimension_numbers<[1], [0], [0], [1], [0, 0, 1, 1], [], []>} : vector<128x64xbf16>, vector<64x128xbf16>, vector<128x128xf32> -> vector<128x128xf32>
    %c6 = arith.constant 6 : index
    %c0_59 = arith.constant 0 : index
    %130 = vector.load %arg3[%c6, %c0_59] : memref<7x128xf32, #tpu.memory_space<vmem>>, vector<1x128xf32>
    %131 = vector.broadcast %130 : vector<1x128xf32> to vector<128x128xf32>
    %132 = arith.addf %129, %131 : vector<128x128xf32>
    %c0_60 = arith.constant 0 : index
    %c0_61 = arith.constant 0 : index
    %133 = vector.load %arg10[%c0_60, %c0_61] : memref<128x128xf32, #tpu.memory_space<vmem>>, vector<128x128xf32>
    tpu.vector_store %arg10[%c0_60, %c0_61], %132 {strides = array<i32>} : memref<128x128xf32, #tpu.memory_space<vmem>>, vector<128x128xf32>,
    return
  }
  func.func @transform_0(%arg0: i32) -> (i32, i32) {
    %c0_i32 = arith.constant 0 : i32
    %c0_i32_0 = arith.constant 0 : i32
    return %arg0, %c0_i32 : i32, i32
  }
  func.func @transform_1(%arg0: i32) -> (i32, i32) {
    %c0_i32 = arith.constant 0 : i32
    %c0_i32_0 = arith.constant 0 : i32
    %c0_i32_1 = arith.constant 0 : i32
    return %c0_i32, %c0_i32_0 : i32, i32
  }
  func.func @transform_2(%arg0: i32) -> (i32, i32) {
    %c0_i32 = arith.constant 0 : i32
    %c0_i32_0 = arith.constant 0 : i32
    %c0_i32_1 = arith.constant 0 : i32
    return %c0_i32, %c0_i32_0 : i32, i32
  }
  func.func @transform_3(%arg0: i32) -> (i32, i32) {
    %c0_i32 = arith.constant 0 : i32
    %c0_i32_0 = arith.constant 0 : i32
    %c0_i32_1 = arith.constant 0 : i32
    return %c0_i32, %c0_i32_0 : i32, i32
  }
  func.func @transform_4(%arg0: i32) -> (i32, i32) {
    %c0_i32 = arith.constant 0 : i32
    %c0_i32_0 = arith.constant 0 : i32
    %c0_i32_1 = arith.constant 0 : i32
    return %c0_i32, %c0_i32_0 : i32, i32
  }
  func.func @transform_5(%arg0: i32) -> (i32, i32) {
    %c0_i32 = arith.constant 0 : i32
    %c0_i32_0 = arith.constant 0 : i32
    %c0_i32_1 = arith.constant 0 : i32
    return %c0_i32, %c0_i32_0 : i32, i32
  }
  func.func @transform_6(%arg0: i32) -> (i32, i32) {
    %c0_i32 = arith.constant 0 : i32
    %c0_i32_0 = arith.constant 0 : i32
    %c0_i32_1 = arith.constant 0 : i32
    return %c0_i32, %c0_i32_0 : i32, i32
  }
  func.func @transform_7(%arg0: i32) -> (i32, i32) {
    %c0_i32 = arith.constant 0 : i32
    %c0_i32_0 = arith.constant 0 : i32
    %c0_i32_1 = arith.constant 0 : i32
    return %c0_i32, %c0_i32_0 : i32, i32
  }
  func.func @transform_8(%arg0: i32) -> (i32, i32) {
    %c0_i32 = arith.constant 0 : i32
    %c0_i32_0 = arith.constant 0 : i32
    %c0_i32_1 = arith.constant 0 : i32
    return %c0_i32, %c0_i32_0 : i32, i32
  }
  func.func @transform_9(%arg0: i32) -> (i32, i32) {
    %c0_i32 = arith.constant 0 : i32
    %c0_i32_0 = arith.constant 0 : i32
    return %arg0, %c0_i32 : i32, i32
  }
}

</mosaic_0001>

<llo_original>
// kernel: tpu_custom_call.1
$region0: #{tpu_custom_call.1}
  #allocation0 [shape = 'u32[]', space=smem, size = 0x4, offset = 0x4, fixed_abs, tag = 'smem constant byte address 0x4 - core index']
  #allocation1 [shape = 'u32[144,128]{1,0:T(1,128)}', space=vmem, size = 0x12000, scoped, tag = 'internal scratch']
  %s0 = inlined_call_operand.vmem [shape: bf16[128,6], index: 0, kind: input, shape index: {}]
  %s1 = inlined_call_operand.vmem [shape: bf16[6,32], index: 1, kind: input, shape index: {}]
  %s2 = inlined_call_operand.vmem [shape: f32[7,128], index: 2, kind: input, shape index: {}]
  %s3 = inlined_call_operand.vmem [shape: bf16[96,64], index: 3, kind: input, shape index: {}]
  %s4 = inlined_call_operand.vmem [shape: bf16[192,64], index: 4, kind: input, shape index: {}]
  %s5 = inlined_call_operand.vmem [shape: bf16[32,64], index: 5, kind: input, shape index: {}]
  %s6 = inlined_call_operand.vmem [shape: bf16[192,64], index: 6, kind: input, shape index: {}]
  %s7 = inlined_call_operand.vmem [shape: bf16[192,64], index: 7, kind: input, shape index: {}]
  %s8 = inlined_call_operand.vmem [shape: bf16[64,128], index: 8, kind: input, shape index: {}]
  %s9 = inlined_call_operand.hbm [shape: f32[128,128], index: 9, kind: output, shape index: {}]
  %s10 = sld [smem:[#allocation0]]
  $region46: #{tpu_custom_call.1} parent=0
    _
  %s12 = ssub.s32 1, %s10
  %s13 = scalar_select 0, %s12, %s10
  $region1: #{tpu_custom_call.1} parent=0
    #allocation2 [shape = 'u8[65536]{0}', space=vmem, size = 0x10000, scoped, tag = 'output window, operand 0, single buffered']
    #allocation3 [shape = 's32[1]{0}', space=sflag, size = 0x4, scoped, tag = 'scoped memory for tpu_custom_call.1']
    %14 = vsyncpa [#allocation3], 0
    // Predicated region
    $region2: #{tpu_custom_call.1} parent=1 // pred_check
      _
    $region3: #{tpu_custom_call.1} parent=1 // pred_check_branch
      %16 = sbr.rel (0) target = $region5
    $region4: #{tpu_custom_call.1} parent=1 // pred_region
      _
    $region5: #{tpu_custom_call.1} parent=1 // pred_fallthru
      _
    // Predicated region
    $region6: #{tpu_custom_call.1} parent=1 // pred_check
      _
    $region7: #{tpu_custom_call.1} parent=1 // pred_check_branch
      %18 = sbr.rel (0) target = $region9
    $region8: #{tpu_custom_call.1} parent=1 // pred_region
      _
    $region9: #{tpu_custom_call.1} parent=1 // pred_fallthru
      _
    // Predicated region
    $region10: #{tpu_custom_call.1} parent=1 // pred_check
      _
    $region11: #{tpu_custom_call.1} parent=1 // pred_check_branch
      %20 = sbr.rel (0) target = $region13
    $region12: #{tpu_custom_call.1} parent=1 // pred_region
      _
    $region13: #{tpu_custom_call.1} parent=1 // pred_fallthru
      _
    // Predicated region
    $region14: #{tpu_custom_call.1} parent=1 // pred_check
      _
    $region15: #{tpu_custom_call.1} parent=1 // pred_check_branch
      %22 = sbr.rel (0) target = $region17
    $region16: #{tpu_custom_call.1} parent=1 // pred_region
      _
    $region17: #{tpu_custom_call.1} parent=1 // pred_fallthru
      _
    // Predicated region
    $region18: #{tpu_custom_call.1} parent=1 // pred_check
      _
    $region19: #{tpu_custom_call.1} parent=1 // pred_check_branch
      %24 = sbr.rel (0) target = $region21
    $region20: #{tpu_custom_call.1} parent=1 // pred_region
      _
    $region21: #{tpu_custom_call.1} parent=1 // pred_fallthru
      _
    // Predicated region
    $region22: #{tpu_custom_call.1} parent=1 // pred_check
      _
    $region23: #{tpu_custom_call.1} parent=1 // pred_check_branch
      %26 = sbr.rel (0) target = $region25
    $region24: #{tpu_custom_call.1} parent=1 // pred_region
      _
    $region25: #{tpu_custom_call.1} parent=1 // pred_fallthru
      _
    // Predicated region
    $region26: #{tpu_custom_call.1} parent=1 // pred_check
      _
    $region27: #{tpu_custom_call.1} parent=1 // pred_check_branch
      %28 = sbr.rel (0) target = $region29
    $region28: #{tpu_custom_call.1} parent=1 // pred_region
      _
    $region29: #{tpu_custom_call.1} parent=1 // pred_fallthru
      _
    // Predicated region
    $region30: #{tpu_custom_call.1} parent=1 // pred_check
      _
    $region31: #{tpu_custom_call.1} parent=1 // pred_check_branch
      %30 = sbr.rel (0) target = $region33
    $region32: #{tpu_custom_call.1} parent=1 // pred_region
      _
    $region33: #{tpu_custom_call.1} parent=1 // pred_fallthru
      _
    // Predicated region
    $region34: #{tpu_custom_call.1} parent=1 // pred_check
      _
    $region35: #{tpu_custom_call.1} parent=1 // pred_check_branch
      %32 = sbr.rel (0) target = $region37
    $region36: #{tpu_custom_call.1} parent=1 // pred_region
      _
    $region37: #{tpu_custom_call.1} parent=1 // pred_fallthru
      _
    %v34 = vlaneseq
    %v35 = vshrl.u32 %v34, 7
    %v36 = vadd.s32 %v35, 8
    %v37 = vadd.s32 %v35, 16
    %v38 = vadd.s32 %v35, 24
    %v39 = vadd.s32 %v35, 32
    %v40 = vadd.s32 %v35, 40
    %v41 = vadd.s32 %v35, 48
    %v42 = vadd.s32 %v35, 56
    %v43 = vadd.s32 %v35, 64
    %v44 = vadd.s32 %v35, 72
    %v45 = vadd.s32 %v35, 80
    %v46 = vadd.s32 %v35, 88
    %v47 = vadd.s32 %v35, 96
    %v48 = vadd.s32 %v35, 104
    %v49 = vadd.s32 %v35, 112
    %v50 = vadd.s32 %v35, 120
    %vm51 = vcmp.lt.s32.totalorder %v35, 0
    %v52 = vsub.s32 0, %v35
    %v53 = vsel %vm51, %v52, %v35
    %v54 = vshrl.u32 %v53, 5
    %v55 = vand.u32 %v53, 31
    %v56 = vsub.s32 0, %v55
    %v57 = vsel %vm51, %v56, %v55
    %vm58 = vcmp.lt.s32.totalorder %v36, 0
    %v59 = vsub.s32 0, %v36
    %v60 = vsel %vm58, %v59, %v36
    %v61 = vshrl.u32 %v60, 5
    %v62 = vand.u32 %v60, 31
    %v63 = vsub.s32 0, %v62
    %v64 = vsel %vm58, %v63, %v62
    %vm65 = vcmp.lt.s32.totalorder %v37, 0
    %v66 = vsub.s32 0, %v37
    %v67 = vsel %vm65, %v66, %v37
    %v68 = vshrl.u32 %v67, 5
    %v69 = vand.u32 %v67, 31
    %v70 = vsub.s32 0, %v69
    %v71 = vsel %vm65, %v70, %v69
    %vm72 = vcmp.lt.s32.totalorder %v38, 0
    %v73 = vsub.s32 0, %v38
    %v74 = vsel %vm72, %v73, %v38
    %v75 = vshrl.u32 %v74, 5
    %v76 = vand.u32 %v74, 31
    %v77 = vsub.s32 0, %v76
    %v78 = vsel %vm72, %v77, %v76
    %vm79 = vcmp.lt.s32.totalorder %v39, 0
    %v80 = vsub.s32 0, %v39
    %v81 = vsel %vm79, %v80, %v39
    %v82 = vshrl.u32 %v81, 5
    %v83 = vand.u32 %v81, 31
    %v84 = vsub.s32 0, %v83
    %v85 = vsel %vm79, %v84, %v83
    %vm86 = vcmp.lt.s32.totalorder %v40, 0
    %v87 = vsub.s32 0, %v40
    %v88 = vsel %vm86, %v87, %v40
    %v89 = vshrl.u32 %v88, 5
    %v90 = vand.u32 %v88, 31
    %v91 = vsub.s32 0, %v90
    %v92 = vsel %vm86, %v91, %v90
    %vm93 = vcmp.lt.s32.totalorder %v41, 0
    %v94 = vsub.s32 0, %v41
    %v95 = vsel %vm93, %v94, %v41
    %v96 = vshrl.u32 %v95, 5
    %v97 = vand.u32 %v95, 31
    %v98 = vsub.s32 0, %v97
    %v99 = vsel %vm93, %v98, %v97
    %vm100 = vcmp.lt.s32.totalorder %v42, 0
    %v101 = vsub.s32 0, %v42
    %v102 = vsel %vm100, %v101, %v42
    %v103 = vshrl.u32 %v102, 5
    %v104 = vand.u32 %v102, 31
    %v105 = vsub.s32 0, %v104
    %v106 = vsel %vm100, %v105, %v104
    %vm107 = vcmp.lt.s32.totalorder %v43, 0
    %v108 = vsub.s32 0, %v43
    %v109 = vsel %vm107, %v108, %v43
    %v110 = vshrl.u32 %v109, 5
    %v111 = vand.u32 %v109, 31
    %v112 = vsub.s32 0, %v111
    %v113 = vsel %vm107, %v112, %v111
    %vm114 = vcmp.lt.s32.totalorder %v44, 0
    %v115 = vsub.s32 0, %v44
    %v116 = vsel %vm114, %v115, %v44
    %v117 = vshrl.u32 %v116, 5
    %v118 = vand.u32 %v116, 31
    %v119 = vsub.s32 0, %v118
    %v120 = vsel %vm114, %v119, %v118
    %vm121 = vcmp.lt.s32.totalorder %v45, 0
    %v122 = vsub.s32 0, %v45
    %v123 = vsel %vm121, %v122, %v45
    %v124 = vshrl.u32 %v123, 5
    %v125 = vand.u32 %v123, 31
    %v126 = vsub.s32 0, %v125
    %v127 = vsel %vm121, %v126, %v125
    %vm128 = vcmp.lt.s32.totalorder %v46, 0
    %v129 = vsub.s32 0, %v46
    %v130 = vsel %vm128, %v129, %v46
    %v131 = vshrl.u32 %v130, 5
    %v132 = vand.u32 %v130, 31
    %v133 = vsub.s32 0, %v132
    %v134 = vsel %vm128, %v133, %v132
    %vm135 = vcmp.lt.s32.totalorder %v47, 0
    %v136 = vsub.s32 0, %v47
    %v137 = vsel %vm135, %v136, %v47
    %v138 = vshrl.u32 %v137, 5
    %v139 = vand.u32 %v137, 31
    %v140 = vsub.s32 0, %v139
    %v141 = vsel %vm135, %v140, %v139
    %vm142 = vcmp.lt.s32.totalorder %v48, 0
    %v143 = vsub.s32 0, %v48
    %v144 = vsel %vm142, %v143, %v48
    %v145 = vshrl.u32 %v144, 5
    %v146 = vand.u32 %v144, 31
    %v147 = vsub.s32 0, %v146
    %v148 = vsel %vm142, %v147, %v146
    %vm149 = vcmp.lt.s32.totalorder %v49, 0
    %v150 = vsub.s32 0, %v49
    %v151 = vsel %vm149, %v150, %v49
    %v152 = vshrl.u32 %v151, 5
    %v153 = vand.u32 %v151, 31
    %v154 = vsub.s32 0, %v153
    %v155 = vsel %vm149, %v154, %v153
    %vm156 = vcmp.lt.s32.totalorder %v50, 0
    %v157 = vsub.s32 0, %v50
    %v158 = vsel %vm156, %v157, %v50
    %v159 = vshrl.u32 %v158, 5
    %v160 = vand.u32 %v158, 31
    %v161 = vsub.s32 0, %v160
    %v162 = vsel %vm156, %v161, %v160
    %vm163 = vcmp.ne.s32.totalorder %v57, 0
    %vm164 = vcmp.ne.s32.totalorder %v64, 0
    %vm165 = vcmp.ne.s32.totalorder %v71, 0
    %vm166 = vcmp.ne.s32.totalorder %v78, 0
    %vm167 = vcmp.ne.s32.totalorder %v85, 0
    %vm168 = vcmp.ne.s32.totalorder %v92, 0
    %vm169 = vcmp.ne.s32.totalorder %v99, 0
    %vm170 = vcmp.ne.s32.totalorder %v106, 0
    %vm171 = vcmp.ne.s32.totalorder %v113, 0
    %vm172 = vcmp.ne.s32.totalorder %v120, 0
    %vm173 = vcmp.ne.s32.totalorder %v127, 0
    %vm174 = vcmp.ne.s32.totalorder %v134, 0
    %vm175 = vcmp.ne.s32.totalorder %v141, 0
    %vm176 = vcmp.ne.s32.totalorder %v148, 0
    %vm177 = vcmp.ne.s32.totalorder %v155, 0
    %vm178 = vcmp.ne.s32.totalorder %v162, 0
    %vm179 = vcmp.lt.s32.totalorder %v57, 0
    %vm180 = vcmp.lt.s32.totalorder %v64, 0
    %vm181 = vcmp.lt.s32.totalorder %v71, 0
    %vm182 = vcmp.lt.s32.totalorder %v78, 0
    %vm183 = vcmp.lt.s32.totalorder %v85, 0
    %vm184 = vcmp.lt.s32.totalorder %v92, 0
    %vm185 = vcmp.lt.s32.totalorder %v99, 0
    %vm186 = vcmp.lt.s32.totalorder %v106, 0
    %vm187 = vcmp.lt.s32.totalorder %v113, 0
    %vm188 = vcmp.lt.s32.totalorder %v120, 0
    %vm189 = vcmp.lt.s32.totalorder %v127, 0
    %vm190 = vcmp.lt.s32.totalorder %v134, 0
    %vm191 = vcmp.lt.s32.totalorder %v141, 0
    %vm192 = vcmp.lt.s32.totalorder %v148, 0
    %vm193 = vcmp.lt.s32.totalorder %v155, 0
    %vm194 = vcmp.lt.s32.totalorder %v162, 0
    %vm195 = vmand %vm179, %vm163
    %vm196 = vmand %vm180, %vm164
    %vm197 = vmand %vm181, %vm165
    %vm198 = vmand %vm182, %vm166
    %vm199 = vmand %vm183, %vm167
    %vm200 = vmand %vm184, %vm168
    %vm201 = vmand %vm185, %vm169
    %vm202 = vmand %vm186, %vm170
    %vm203 = vmand %vm187, %vm171
    %vm204 = vmand %vm188, %vm172
    %vm205 = vmand %vm189, %vm173
    %vm206 = vmand %vm190, %vm174
    %vm207 = vmand %vm191, %vm175
    %vm208 = vmand %vm192, %vm176
    %vm209 = vmand %vm193, %vm177
    %vm210 = vmand %vm194, %vm178
    %v211 = vadd.s32 %v57, 32
    %v212 = vadd.s32 %v64, 32
    %v213 = vadd.s32 %v71, 32
    %v214 = vadd.s32 %v78, 32
    %v215 = vadd.s32 %v85, 32
    %v216 = vadd.s32 %v92, 32
    %v217 = vadd.s32 %v99, 32
    %v218 = vadd.s32 %v106, 32
    %v219 = vadd.s32 %v113, 32
    %v220 = vadd.s32 %v120, 32
    %v221 = vadd.s32 %v127, 32
    %v222 = vadd.s32 %v134, 32
    %v223 = vadd.s32 %v141, 32
    %v224 = vadd.s32 %v148, 32
    %v225 = vadd.s32 %v155, 32
    %v226 = vadd.s32 %v162, 32
    %v227 = vsel %vm195, %v211, %v57
    %v228 = vsel %vm196, %v212, %v64
    %v229 = vsel %vm197, %v213, %v71
    %v230 = vsel %vm198, %v214, %v78
    %v231 = vsel %vm199, %v215, %v85
    %v232 = vsel %vm200, %v216, %v92
    %v233 = vsel %vm201, %v217, %v99
    %v234 = vsel %vm202, %v218, %v106
    %v235 = vsel %vm203, %v219, %v113
    %v236 = vsel %vm204, %v220, %v120
    %v237 = vsel %vm205, %v221, %v127
    %v238 = vsel %vm206, %v222, %v134
    %v239 = vsel %vm207, %v223, %v141
    %v240 = vsel %vm208, %v224, %v148
    %v241 = vsel %vm209, %v225, %v155
    %v242 = vsel %vm210, %v226, %v162
    %v243 = vld [vmem:[%s0] sm:$0xf]
    %v244 = vld [vmem:[%s0 + $0x4] sm:$0xf]
    %v245 = vld [vmem:[%s0 + $0x8] sm:$0xf]
    %v246 = vld [vmem:[%s0 + $0xc] sm:$0xf]
    %v247 = vld [vmem:[%s0 + $0x10] sm:$0xf]
    %v248 = vld [vmem:[%s0 + $0x14] sm:$0xf]
    %v249 = vld [vmem:[%s0 + $0x18] sm:$0xf]
    %v250 = vld [vmem:[%s0 + $0x1c] sm:$0xf]
    %v251 = vld [vmem:[%s0 + $0x20] sm:$0xf]
    %v252 = vld [vmem:[%s0 + $0x24] sm:$0xf]
    %v253 = vld [vmem:[%s0 + $0x28] sm:$0xf]
    %v254 = vld [vmem:[%s0 + $0x2c] sm:$0xf]
    %v255 = vld [vmem:[%s0 + $0x30] sm:$0xf]
    %v256 = vld [vmem:[%s0 + $0x34] sm:$0xf]
    %v257 = vld [vmem:[%s0 + $0x38] sm:$0xf]
    %v258 = vld [vmem:[%s0 + $0x3c] sm:$0xf]
    %v259 = vld [vmem:[%s1] sm:$0x7]
    %v260 = vld [vmem:[%s2] sm:$0x1]
    %v261 = vlaneseq
    %v262 = vshrl.u32 %v261, 7
    %v263 = vsub.s32 0, %v262
    %v264 = vrot.slane %v260, %v263
    %v281 = vunpack.c.l.b16 %v243
    %v282 = vunpack.c.l.b16 %v244
    %v283 = vunpack.c.l.b16 %v245
    %v284 = vunpack.c.l.b16 %v246
    %v285 = vunpack.c.l.b16 %v247
    %v286 = vunpack.c.l.b16 %v248
    %v287 = vunpack.c.l.b16 %v249
    %v288 = vunpack.c.l.b16 %v250
    %v289 = vunpack.c.l.b16 %v251
    %v290 = vunpack.c.l.b16 %v252
    %v291 = vunpack.c.l.b16 %v253
    %v292 = vunpack.c.l.b16 %v254
    %v293 = vunpack.c.l.b16 %v255
    %v294 = vunpack.c.l.b16 %v256
    %v295 = vunpack.c.l.b16 %v257
    %v296 = vunpack.c.l.b16 %v258
    %v297 = vpack.c.b16 %v282, %v281
    %v298 = vpack.c.b16 %v284, %v283
    %v299 = vpack.c.b16 %v286, %v285
    %v300 = vpack.c.b16 %v288, %v287
    %v301 = vpack.c.b16 %v290, %v289
    %v302 = vpack.c.b16 %v292, %v291
    %v303 = vpack.c.b16 %v294, %v293
    %v304 = vpack.c.b16 %v296, %v295
    %vm305 = vcmask 48128
    %v307 = vsel %vm305, %v297, 0
    %v310 = vsel %vm305, %v298, 0
    %v313 = vsel %vm305, %v299, 0
    %v316 = vsel %vm305, %v300, 0
    %v319 = vsel %vm305, %v301, 0
    %v322 = vsel %vm305, %v302, 0
    %v325 = vsel %vm305, %v303, 0
    %v328 = vsel %vm305, %v304, 0
    %vm330 = vcmask 1042432
    %v332 = vsel %vm330, %v259, 0
    %334 = vmatprep.subr.bf16.mxu0 0
    %335 = vmatpush1.bf16.msra.mxu0 0
    %336 = vmatprep.subr.bf16.mxu0 0
    %337 = vmatpush1.bf16.msra.mxu0 0
    %338 = vmatprep.subr.bf16.mxu0 0
    %339 = vmatpush1.bf16.msra.mxu0 0
    %340 = vmatprep.subr.bf16.mxu0 0
    %341 = vmatpush1.bf16.msra.mxu0 0
    %342 = vmatprep.subr.bf16.mxu0 0
    %343 = vmatpush1.bf16.msra.mxu0 0
    %344 = vmatprep.subr.bf16.mxu0 0
    %345 = vmatpush1.bf16.msra.mxu0 0
    %346 = vmatprep.subr.bf16.mxu0 0
    %347 = vmatpush1.bf16.msra.mxu0 0
    %348 = vmatprep.subr.bf16.mxu0 0
    %349 = vmatpush1.bf16.msra.mxu0 %v332
    %350 = vmatprep.subr.bf16.mxu0 0
    %351 = vmatpush2.bf16.msra.mxu0 0
    %352 = vmatprep.subr.bf16.mxu0 0
    %353 = vmatpush2.bf16.msra.mxu0 0
    %354 = vmatprep.subr.bf16.mxu0 0
    %355 = vmatpush2.bf16.msra.mxu0 0
    %356 = vmatprep.subr.bf16.mxu0 0
    %357 = vmatpush2.bf16.msra.mxu0 0
    %358 = vmatprep.subr.bf16.mxu0 0
    %359 = vmatpush2.bf16.msra.mxu0 0
    %360 = vmatprep.subr.bf16.mxu0 0
    %361 = vmatpush2.bf16.msra.mxu0 0
    %362 = vmatprep.subr.bf16.mxu0 0
    %363 = vmatpush2.bf16.msra.mxu0 0
    %364 = vmatprep.subr.bf16.mxu0 0
    %365 = vmatpush2.bf16.msra.mxu0 0
    %366 = vmatprep.mubr.bf16.mxu0 0
    %367 = vmatmul.mubr.bf16.gmra.mxu0 %v307
    %v368 = vpop.f32.mrf.mxu0
    %v369 = vadd.f32 %v264, %v368
    %v370 = vpop.f32.mrf.mxu0
    %v371 = vpop.f32.mrf.mxu0
    %v372 = vadd.f32 %v264, %v371
    %v373 = vpop.f32.mrf.mxu0
    %374 = vmatprep.mubr.bf16.mxu0 0
    %375 = vmatmul.mubr.bf16.gmra.mxu0 %v310
    %v376 = vpop.f32.mrf.mxu0
    %v377 = vadd.f32 %v264, %v376
    %v378 = vpop.f32.mrf.mxu0
    %v379 = vpop.f32.mrf.mxu0
    %v380 = vadd.f32 %v264, %v379
    %v381 = vpop.f32.mrf.mxu0
    %382 = vmatprep.mubr.bf16.mxu0 0
    %383 = vmatmul.mubr.bf16.gmra.mxu0 %v313
    %v384 = vpop.f32.mrf.mxu0
    %v385 = vadd.f32 %v264, %v384
    %v386 = vpop.f32.mrf.mxu0
    %v387 = vpop.f32.mrf.mxu0
    %v388 = vadd.f32 %v264, %v387
    %v389 = vpop.f32.mrf.mxu0
    %390 = vmatprep.mubr.bf16.mxu0 0
    %391 = vmatmul.mubr.bf16.gmra.mxu0 %v316
    %v392 = vpop.f32.mrf.mxu0
    %v393 = vadd.f32 %v264, %v392
    %v394 = vpop.f32.mrf.mxu0
    %v395 = vpop.f32.mrf.mxu0
    %v396 = vadd.f32 %v264, %v395
    %v397 = vpop.f32.mrf.mxu0
    %398 = vmatprep.mubr.bf16.mxu0 0
    %399 = vmatmul.mubr.bf16.gmra.mxu0 %v319
    %v400 = vpop.f32.mrf.mxu0
    %v401 = vadd.f32 %v264, %v400
    %v402 = vpop.f32.mrf.mxu0
    %v403 = vpop.f32.mrf.mxu0
    %v404 = vadd.f32 %v264, %v403
    %v405 = vpop.f32.mrf.mxu0
    %406 = vmatprep.mubr.bf16.mxu0 0
    %407 = vmatmul.mubr.bf16.gmra.mxu0 %v322
    %v408 = vpop.f32.mrf.mxu0
    %v409 = vadd.f32 %v264, %v408
    %v410 = vpop.f32.mrf.mxu0
    %v411 = vpop.f32.mrf.mxu0
    %v412 = vadd.f32 %v264, %v411
    %v413 = vpop.f32.mrf.mxu0
    %414 = vmatprep.mubr.bf16.mxu0 0
    %415 = vmatmul.mubr.bf16.gmra.mxu0 %v325
    %v416 = vpop.f32.mrf.mxu0
    %v417 = vadd.f32 %v264, %v416
    %v418 = vpop.f32.mrf.mxu0
    %v419 = vpop.f32.mrf.mxu0
    %v420 = vadd.f32 %v264, %v419
    %v421 = vpop.f32.mrf.mxu0
    %422 = vmatprep.mubr.bf16.mxu0 0
    %423 = vmatmul.mubr.bf16.gmra.mxu0 %v328
    %v424 = vpop.f32.mrf.mxu0
    %v425 = vadd.f32 %v264, %v424
    %v426 = vpop.f32.mrf.mxu0
    %v427 = vpop.f32.mrf.mxu0
    %v428 = vadd.f32 %v264, %v427
    %v429 = vpop.f32.mrf.mxu0
    %430 = vdwg.mxu0
    %v431 = vrot.slane %v369, 6
    %v432 = vrot.slane %v372, 6
    %v433 = vrot.slane %v377, 6
    %v434 = vrot.slane %v380, 6
    %v435 = vrot.slane %v385, 6
    %v436 = vrot.slane %v388, 6
    %v437 = vrot.slane %v393, 6
    %v438 = vrot.slane %v396, 6
    %v439 = vrot.slane %v401, 6
    %v440 = vrot.slane %v404, 6
    %v441 = vrot.slane %v409, 6
    %v442 = vrot.slane %v412, 6
    %v443 = vrot.slane %v417, 6
    %v444 = vrot.slane %v420, 6
    %v445 = vrot.slane %v425, 6
    %v446 = vrot.slane %v428, 6
    %vm447 = vcmp.lt.s32.totalorder %v35, 2
    %v448 = vsel %vm447, %v445, %v446
    %v449 = vsel %vm447, %v444, %v445
    %v450 = vsel %vm447, %v443, %v444
    %v451 = vsel %vm447, %v442, %v443
    %v452 = vsel %vm447, %v441, %v442
    %v453 = vsel %vm447, %v440, %v441
    %v454 = vsel %vm447, %v439, %v440
    %v455 = vsel %vm447, %v438, %v439
    %v456 = vsel %vm447, %v437, %v438
    %v457 = vsel %vm447, %v436, %v437
    %v458 = vsel %vm447, %v435, %v436
    %v459 = vsel %vm447, %v434, %v435
    %v460 = vsel %vm447, %v433, %v434
    %v461 = vsel %vm447, %v432, %v433
    %v462 = vsel %vm447, %v431, %v432
    %v463 = vsel %vm447, %v446, %v431
    %vm464 = vcmp.ge.s32.totalorder %v227, 2
    %vm465 = vcmp.ge.s32.totalorder %v228, 2
    %vm466 = vcmp.ge.s32.totalorder %v229, 2
    %vm467 = vcmp.ge.s32.totalorder %v230, 2
    %vm468 = vcmp.ge.s32.totalorder %v231, 2
    %vm469 = vcmp.ge.s32.totalorder %v232, 2
    %vm470 = vcmp.ge.s32.totalorder %v233, 2
    %vm471 = vcmp.ge.s32.totalorder %v234, 2
    %vm472 = vcmp.ge.s32.totalorder %v235, 2
    %vm473 = vcmp.ge.s32.totalorder %v236, 2
    %vm474 = vcmp.ge.s32.totalorder %v237, 2
    %vm475 = vcmp.ge.s32.totalorder %v238, 2
    %vm476 = vcmp.ge.s32.totalorder %v239, 2
    %vm477 = vcmp.ge.s32.totalorder %v240, 2
    %vm478 = vcmp.ge.s32.totalorder %v241, 2
    %vm479 = vcmp.ge.s32.totalorder %v242, 2
    %v480 = vsel %vm464, 1, 0
    %v481 = vsel %vm465, 1, 0
    %v482 = vsel %vm466, 1, 0
    %v483 = vsel %vm467, 1, 0
    %v484 = vsel %vm468, 1, 0
    %v485 = vsel %vm469, 1, 0
    %v486 = vsel %vm470, 1, 0
    %v487 = vsel %vm471, 1, 0
    %v488 = vsel %vm472, 1, 0
    %v489 = vsel %vm473, 1, 0
    %v490 = vsel %vm474, 1, 0
    %v491 = vsel %vm475, 1, 0
    %v492 = vsel %vm476, 1, 0
    %v493 = vsel %vm477, 1, 0
    %v494 = vsel %vm478, 1, 0
    %v495 = vsel %vm479, 1, 0
    %vm496 = vcmp.eq.s32.totalorder %v480, 1
    %vm497 = vcmp.eq.s32.totalorder %v481, 1
    %vm498 = vcmp.eq.s32.totalorder %v482, 1
    %vm499 = vcmp.eq.s32.totalorder %v483, 1
    %vm500 = vcmp.eq.s32.totalorder %v484, 1
    %vm501 = vcmp.eq.s32.totalorder %v485, 1
    %vm502 = vcmp.eq.s32.totalorder %v486, 1
    %vm503 = vcmp.eq.s32.totalorder %v487, 1
    %vm504 = vcmp.eq.s32.totalorder %v488, 1
    %vm505 = vcmp.eq.s32.totalorder %v489, 1
    %vm506 = vcmp.eq.s32.totalorder %v490, 1
    %vm507 = vcmp.eq.s32.totalorder %v491, 1
    %vm508 = vcmp.eq.s32.totalorder %v492, 1
    %vm509 = vcmp.eq.s32.totalorder %v493, 1
    %vm510 = vcmp.eq.s32.totalorder %v494, 1
    %vm511 = vcmp.eq.s32.totalorder %v495, 1
    %v512 = vsel %vm496, %v463, 0.0
    %v513 = vsel %vm497, %v462, 0.0
    %v514 = vsel %vm498, %v461, 0.0
    %v515 = vsel %vm499, %v460, 0.0
    %v516 = vsel %vm500, %v459, 0.0
    %v517 = vsel %vm501, %v458, 0.0
    %v518 = vsel %vm502, %v457, 0.0
    %v519 = vsel %vm503, %v456, 0.0
    %v520 = vsel %vm504, %v455, 0.0
    %v521 = vsel %vm505, %v454, 0.0
    %v522 = vsel %vm506, %v453, 0.0
    %v523 = vsel %vm507, %v452, 0.0
    %v524 = vsel %vm508, %v451, 0.0
    %v525 = vsel %vm509, %v450, 0.0
    %v526 = vsel %vm510, %v449, 0.0
    %v527 = vsel %vm511, %v448, 0.0
    %v528 = vrot.slane %v369, 7
    %v529 = vrot.slane %v372, 7
    %v530 = vrot.slane %v377, 7
    %v531 = vrot.slane %v380, 7
    %v532 = vrot.slane %v385, 7
    %v533 = vrot.slane %v388, 7
    %v534 = vrot.slane %v393, 7
    %v535 = vrot.slane %v396, 7
    %v536 = vrot.slane %v401, 7
    %v537 = vrot.slane %v404, 7
    %v538 = vrot.slane %v409, 7
    %v539 = vrot.slane %v412, 7
    %v540 = vrot.slane %v417, 7
    %v541 = vrot.slane %v420, 7
    %v542 = vrot.slane %v425, 7
    %v543 = vrot.slane %v428, 7
    %vm544 = vcmp.lt.s32.totalorder %v35, 1
    %v545 = vsel %vm544, %v542, %v543
    %v546 = vsel %vm544, %v541, %v542
    %v547 = vsel %vm544, %v540, %v541
    %v548 = vsel %vm544, %v539, %v540
    %v549 = vsel %vm544, %v538, %v539
    %v550 = vsel %vm544, %v537, %v538
    %v551 = vsel %vm544, %v536, %v537
    %v552 = vsel %vm544, %v535, %v536
    %v553 = vsel %vm544, %v534, %v535
    %v554 = vsel %vm544, %v533, %v534
    %v555 = vsel %vm544, %v532, %v533
    %v556 = vsel %vm544, %v531, %v532
    %v557 = vsel %vm544, %v530, %v531
    %v558 = vsel %vm544, %v529, %v530
    %v559 = vsel %vm544, %v528, %v529
    %v560 = vsel %vm544, %v543, %v528
    %vm561 = vcmp.ge.s32.totalorder %v227, 1
    %vm562 = vcmp.ge.s32.totalorder %v228, 1
    %vm563 = vcmp.ge.s32.totalorder %v229, 1
    %vm564 = vcmp.ge.s32.totalorder %v230, 1
    %vm565 = vcmp.ge.s32.totalorder %v231, 1
    %vm566 = vcmp.ge.s32.totalorder %v232, 1
    %vm567 = vcmp.ge.s32.totalorder %v233, 1
    %vm568 = vcmp.ge.s32.totalorder %v234, 1
    %vm569 = vcmp.ge.s32.totalorder %v235, 1
    %vm570 = vcmp.ge.s32.totalorder %v236, 1
    %vm571 = vcmp.ge.s32.totalorder %v237, 1
    %vm572 = vcmp.ge.s32.totalorder %v238, 1
    %vm573 = vcmp.ge.s32.totalorder %v239, 1
    %vm574 = vcmp.ge.s32.totalorder %v240, 1
    %vm575 = vcmp.ge.s32.totalorder %v241, 1
    %vm576 = vcmp.ge.s32.totalorder %v242, 1
    %v577 = vsel %vm561, 1, 0
    %v578 = vsel %vm562, 1, 0
    %v579 = vsel %vm563, 1, 0
    %v580 = vsel %vm564, 1, 0
    %v581 = vsel %vm565, 1, 0
    %v582 = vsel %vm566, 1, 0
    %v583 = vsel %vm567, 1, 0
    %v584 = vsel %vm568, 1, 0
    %v585 = vsel %vm569, 1, 0
    %v586 = vsel %vm570, 1, 0
    %v587 = vsel %vm571, 1, 0
    %v588 = vsel %vm572, 1, 0
    %v589 = vsel %vm573, 1, 0
    %v590 = vsel %vm574, 1, 0
    %v591 = vsel %vm575, 1, 0
    %v592 = vsel %vm576, 1, 0
    %vm593 = vcmp.eq.s32.totalorder %v577, 1
    %vm594 = vcmp.eq.s32.totalorder %v578, 1
    %vm595 = vcmp.eq.s32.totalorder %v579, 1
    %vm596 = vcmp.eq.s32.totalorder %v580, 1
    %vm597 = vcmp.eq.s32.totalorder %v581, 1
    %vm598 = vcmp.eq.s32.totalorder %v582, 1
    %vm599 = vcmp.eq.s32.totalorder %v583, 1
    %vm600 = vcmp.eq.s32.totalorder %v584, 1
    %vm601 = vcmp.eq.s32.totalorder %v585, 1
    %vm602 = vcmp.eq.s32.totalorder %v586, 1
    %vm603 = vcmp.eq.s32.totalorder %v587, 1
    %vm604 = vcmp.eq.s32.totalorder %v588, 1
    %vm605 = vcmp.eq.s32.totalorder %v589, 1
    %vm606 = vcmp.eq.s32.totalorder %v590, 1
    %vm607 = vcmp.eq.s32.totalorder %v591, 1
    %vm608 = vcmp.eq.s32.totalorder %v592, 1
    %v609 = vsel %vm593, %v560, 0.0
    %v610 = vsel %vm594, %v559, 0.0
    %v611 = vsel %vm595, %v558, 0.0
    %v612 = vsel %vm596, %v557, 0.0
    %v613 = vsel %vm597, %v556, 0.0
    %v614 = vsel %vm598, %v555, 0.0
    %v615 = vsel %vm599, %v554, 0.0
    %v616 = vsel %vm600, %v553, 0.0
    %v617 = vsel %vm601, %v552, 0.0
    %v618 = vsel %vm602, %v551, 0.0
    %v619 = vsel %vm603, %v550, 0.0
    %v620 = vsel %vm604, %v549, 0.0
    %v621 = vsel %vm605, %v548, 0.0
    %v622 = vsel %vm606, %v547, 0.0
    %v623 = vsel %vm607, %v546, 0.0
    %v624 = vsel %vm608, %v545, 0.0
    %641 = vrot.lane.b32.xlu0 %v609, 32
    %v642 = vpop.permute.xlu0 %641
    %643 = vrot.lane.b32.xlu0 %v610, 32
    %v644 = vpop.permute.xlu0 %643
    %645 = vrot.lane.b32.xlu0 %v611, 32
    %v646 = vpop.permute.xlu0 %645
    %647 = vrot.lane.b32.xlu0 %v612, 32
    %v648 = vpop.permute.xlu0 %647
    %649 = vrot.lane.b32.xlu0 %v613, 32
    %v650 = vpop.permute.xlu0 %649
    %651 = vrot.lane.b32.xlu0 %v614, 32
    %v652 = vpop.permute.xlu0 %651
    %653 = vrot.lane.b32.xlu0 %v615, 32
    %v654 = vpop.permute.xlu0 %653
    %655 = vrot.lane.b32.xlu0 %v616, 32
    %v656 = vpop.permute.xlu0 %655
    %657 = vrot.lane.b32.xlu0 %v617, 32
    %v658 = vpop.permute.xlu0 %657
    %659 = vrot.lane.b32.xlu0 %v618, 32
    %v660 = vpop.permute.xlu0 %659
    %661 = vrot.lane.b32.xlu0 %v619, 32
    %v662 = vpop.permute.xlu0 %661
    %663 = vrot.lane.b32.xlu0 %v620, 32
    %v664 = vpop.permute.xlu0 %663
    %665 = vrot.lane.b32.xlu0 %v621, 32
    %v666 = vpop.permute.xlu0 %665
    %667 = vrot.lane.b32.xlu0 %v622, 32
    %v668 = vpop.permute.xlu0 %667
    %669 = vrot.lane.b32.xlu0 %v623, 32
    %v670 = vpop.permute.xlu0 %669
    %671 = vrot.lane.b32.xlu0 %v624, 32
    %v672 = vpop.permute.xlu0 %671
    %705 = vrot.lane.b32.xlu0 %v369, 64
    %v706 = vpop.permute.xlu0 %705
    %707 = vrot.lane.b32.xlu0 %v372, 64
    %v708 = vpop.permute.xlu0 %707
    %709 = vrot.lane.b32.xlu0 %v377, 64
    %v710 = vpop.permute.xlu0 %709
    %711 = vrot.lane.b32.xlu0 %v380, 64
    %v712 = vpop.permute.xlu0 %711
    %713 = vrot.lane.b32.xlu0 %v385, 64
    %v714 = vpop.permute.xlu0 %713
    %715 = vrot.lane.b32.xlu0 %v388, 64
    %v716 = vpop.permute.xlu0 %715
    %717 = vrot.lane.b32.xlu0 %v393, 64
    %v718 = vpop.permute.xlu0 %717
    %719 = vrot.lane.b32.xlu0 %v396, 64
    %v720 = vpop.permute.xlu0 %719
    %721 = vrot.lane.b32.xlu0 %v401, 64
    %v722 = vpop.permute.xlu0 %721
    %723 = vrot.lane.b32.xlu0 %v404, 64
    %v724 = vpop.permute.xlu0 %723
    %725 = vrot.lane.b32.xlu0 %v409, 64
    %v726 = vpop.permute.xlu0 %725
    %727 = vrot.lane.b32.xlu0 %v412, 64
    %v728 = vpop.permute.xlu0 %727
    %729 = vrot.lane.b32.xlu0 %v417, 64
    %v730 = vpop.permute.xlu0 %729
    %731 = vrot.lane.b32.xlu0 %v420, 64
    %v732 = vpop.permute.xlu0 %731
    %733 = vrot.lane.b32.xlu0 %v425, 64
    %v734 = vpop.permute.xlu0 %733
    %735 = vrot.lane.b32.xlu0 %v428, 64
    %v736 = vpop.permute.xlu0 %735
    %vm753 = vcmask 261120
    %v754 = vsel %vm753, %v512, %v642
    %v755 = vsel %vm753, %v513, %v644
    %v756 = vsel %vm753, %v514, %v646
    %v757 = vsel %vm753, %v515, %v648
    %v758 = vsel %vm753, %v516, %v650
    %v759 = vsel %vm753, %v517, %v652
    %v760 = vsel %vm753, %v518, %v654
    %v761 = vsel %vm753, %v519, %v656
    %v762 = vsel %vm753, %v520, %v658
    %v763 = vsel %vm753, %v521, %v660
    %v764 = vsel %vm753, %v522, %v662
    %v765 = vsel %vm753, %v523, %v664
    %v766 = vsel %vm753, %v524, %v666
    %v767 = vsel %vm753, %v525, %v668
    %v768 = vsel %vm753, %v526, %v670
    %v769 = vsel %vm753, %v527, %v672
    %vm770 = vcmask 523264
    %v771 = vsel %vm770, %v754, %v706
    %v772 = vsel %vm770, %v755, %v708
    %v773 = vsel %vm770, %v756, %v710
    %v774 = vsel %vm770, %v757, %v712
    %v775 = vsel %vm770, %v758, %v714
    %v776 = vsel %vm770, %v759, %v716
    %v777 = vsel %vm770, %v760, %v718
    %v778 = vsel %vm770, %v761, %v720
    %v779 = vsel %vm770, %v762, %v722
    %v780 = vsel %vm770, %v763, %v724
    %v781 = vsel %vm770, %v764, %v726
    %v782 = vsel %vm770, %v765, %v728
    %v783 = vsel %vm770, %v766, %v730
    %v784 = vsel %vm770, %v767, %v732
    %v785 = vsel %vm770, %v768, %v734
    %v786 = vsel %vm770, %v769, %v736
    %v787 = vpack.c.bf16 %v772, %v771
    %v788 = vpack.c.bf16 %v774, %v773
    %v789 = vpack.c.bf16 %v776, %v775
    %v790 = vpack.c.bf16 %v778, %v777
    %v791 = vpack.c.bf16 %v780, %v779
    %v792 = vpack.c.bf16 %v782, %v781
    %v793 = vpack.c.bf16 %v784, %v783
    %v794 = vpack.c.bf16 %v786, %v785
    %v795 = vld [vmem:[%s3] sm:$0xf]
    %v796 = vld [vmem:[%s3 + $0x4] sm:$0xf]
    %v797 = vld [vmem:[%s3 + $0x8] sm:$0xf]
    %v798 = vld [vmem:[%s3 + $0xc] sm:$0xf]
    %v799 = vld [vmem:[%s3 + $0x10] sm:$0xf]
    %v800 = vld [vmem:[%s3 + $0x14] sm:$0xf]
    %v801 = vld [vmem:[%s3 + $0x18] sm:$0xf]
    %v802 = vld [vmem:[%s3 + $0x1c] sm:$0xf]
    %v803 = vld [vmem:[%s3 + $0x20] sm:$0xf]
    %v804 = vld [vmem:[%s3 + $0x24] sm:$0xf]
    %v805 = vld [vmem:[%s3 + $0x28] sm:$0xf]
    %v806 = vld [vmem:[%s3 + $0x2c] sm:$0xf]
    %v807 = vld [vmem:[%s2 + $0x1] sm:$0x1]
    %v808 = vlaneseq
    %v809 = vshrl.u32 %v808, 7
    %v810 = vsub.s32 0, %v809
    %v811 = vrot.slane %v807, %v810
    %v824 = vunpack.c.l.b16 %v795
    %v825 = vunpack.c.l.b16 %v796
    %v826 = vunpack.c.l.b16 %v797
    %v827 = vunpack.c.l.b16 %v798
    %v828 = vunpack.c.l.b16 %v799
    %v829 = vunpack.c.l.b16 %v800
    %v830 = vunpack.c.l.b16 %v801
    %v831 = vunpack.c.l.b16 %v802
    %v832 = vunpack.c.l.b16 %v803
    %v833 = vunpack.c.l.b16 %v804
    %v834 = vunpack.c.l.b16 %v805
    %v835 = vunpack.c.l.b16 %v806
    %v836 = vpack.c.b16 %v825, %v824
    %v837 = vpack.c.b16 %v827, %v826
    %v838 = vpack.c.b16 %v829, %v828
    %v839 = vpack.c.b16 %v831, %v830
    %v840 = vpack.c.b16 %v833, %v832
    %v841 = vpack.c.b16 %v835, %v834
    %vm848 = vcmask 785408
    %v850 = vsel %vm848, %v787, 0
    %v853 = vsel %vm848, %v788, 0
    %v856 = vsel %vm848, %v789, 0
    %v859 = vsel %vm848, %v790, 0
    %v862 = vsel %vm848, %v791, 0
    %v865 = vsel %vm848, %v792, 0
    %v868 = vsel %vm848, %v793, 0
    %v871 = vsel %vm848, %v794, 0
    %873 = vmatprep.subr.bf16.mxu0 0
    %874 = vmatpush1.bf16.msra.mxu0 0
    %875 = vmatprep.subr.bf16.mxu0 0
    %876 = vmatpush1.bf16.msra.mxu0 0
    %877 = vmatprep.subr.bf16.mxu0 0
    %878 = vmatpush1.bf16.msra.mxu0 %v841
    %879 = vmatprep.subr.bf16.mxu0 0
    %880 = vmatpush1.bf16.msra.mxu0 %v840
    %881 = vmatprep.subr.bf16.mxu0 0
    %882 = vmatpush1.bf16.msra.mxu0 %v839
    %883 = vmatprep.subr.bf16.mxu0 0
    %884 = vmatpush1.bf16.msra.mxu0 %v838
    %885 = vmatprep.subr.bf16.mxu0 0
    %886 = vmatpush1.bf16.msra.mxu0 %v837
    %887 = vmatprep.subr.bf16.mxu0 0
    %888 = vmatpush1.bf16.msra.mxu0 %v836
    %889 = vmatprep.subr.bf16.mxu0 0
    %890 = vmatpush2.bf16.msra.mxu0 0
    %891 = vmatprep.subr.bf16.mxu0 0
    %892 = vmatpush2.bf16.msra.mxu0 0
    %893 = vmatprep.subr.bf16.mxu0 0
    %894 = vmatpush2.bf16.msra.mxu0 0
    %895 = vmatprep.subr.bf16.mxu0 0
    %896 = vmatpush2.bf16.msra.mxu0 0
    %897 = vmatprep.subr.bf16.mxu0 0
    %898 = vmatpush2.bf16.msra.mxu0 0
    %899 = vmatprep.subr.bf16.mxu0 0
    %900 = vmatpush2.bf16.msra.mxu0 0
    %901 = vmatprep.subr.bf16.mxu0 0
    %902 = vmatpush2.bf16.msra.mxu0 0
    %903 = vmatprep.subr.bf16.mxu0 0
    %904 = vmatpush2.bf16.msra.mxu0 0
    %905 = vmatprep.mubr.bf16.mxu0 0
    %906 = vmatmul.mubr.bf16.gmra.mxu0 %v850
    %v907 = vpop.f32.mrf.mxu0
    %v908 = vadd.f32 %v811, %v907
    %v909 = vpop.f32.mrf.mxu0
    %v910 = vpop.f32.mrf.mxu0
    %v911 = vadd.f32 %v811, %v910
    %v912 = vpop.f32.mrf.mxu0
    %913 = vmatprep.mubr.bf16.mxu0 0
    %914 = vmatmul.mubr.bf16.gmra.mxu0 %v853
    %v915 = vpop.f32.mrf.mxu0
    %v916 = vadd.f32 %v811, %v915
    %v917 = vpop.f32.mrf.mxu0
    %v918 = vpop.f32.mrf.mxu0
    %v919 = vadd.f32 %v811, %v918
    %v920 = vpop.f32.mrf.mxu0
    %921 = vmatprep.mubr.bf16.mxu0 0
    %922 = vmatmul.mubr.bf16.gmra.mxu0 %v856
    %v923 = vpop.f32.mrf.mxu0
    %v924 = vadd.f32 %v811, %v923
    %v925 = vpop.f32.mrf.mxu0
    %v926 = vpop.f32.mrf.mxu0
    %v927 = vadd.f32 %v811, %v926
    %v928 = vpop.f32.mrf.mxu0
    %929 = vmatprep.mubr.bf16.mxu0 0
    %930 = vmatmul.mubr.bf16.gmra.mxu0 %v859
    %v931 = vpop.f32.mrf.mxu0
    %v932 = vadd.f32 %v811, %v931
    %v933 = vpop.f32.mrf.mxu0
    %v934 = vpop.f32.mrf.mxu0
    %v935 = vadd.f32 %v811, %v934
    %v936 = vpop.f32.mrf.mxu0
    %937 = vmatprep.mubr.bf16.mxu0 0
    %938 = vmatmul.mubr.bf16.gmra.mxu0 %v862
    %v939 = vpop.f32.mrf.mxu0
    %v940 = vadd.f32 %v811, %v939
    %v941 = vpop.f32.mrf.mxu0
    %v942 = vpop.f32.mrf.mxu0
    %v943 = vadd.f32 %v811, %v942
    %v944 = vpop.f32.mrf.mxu0
    %945 = vmatprep.mubr.bf16.mxu0 0
    %946 = vmatmul.mubr.bf16.gmra.mxu0 %v865
    %v947 = vpop.f32.mrf.mxu0
    %v948 = vadd.f32 %v811, %v947
    %v949 = vpop.f32.mrf.mxu0
    %v950 = vpop.f32.mrf.mxu0
    %v951 = vadd.f32 %v811, %v950
    %v952 = vpop.f32.mrf.mxu0
    %953 = vmatprep.mubr.bf16.mxu0 0
    %954 = vmatmul.mubr.bf16.gmra.mxu0 %v868
    %v955 = vpop.f32.mrf.mxu0
    %v956 = vadd.f32 %v811, %v955
    %v957 = vpop.f32.mrf.mxu0
    %v958 = vpop.f32.mrf.mxu0
    %v959 = vadd.f32 %v811, %v958
    %v960 = vpop.f32.mrf.mxu0
    %961 = vmatprep.mubr.bf16.mxu0 0
    %962 = vmatmul.mubr.bf16.gmra.mxu0 %v871
    %v963 = vpop.f32.mrf.mxu0
    %v964 = vadd.f32 %v811, %v963
    %v965 = vpop.f32.mrf.mxu0
    %v966 = vpop.f32.mrf.mxu0
    %v967 = vadd.f32 %v811, %v966
    %v968 = vpop.f32.mrf.mxu0
    %969 = vdwg.mxu0
    %v970 = vmax.f32 %v908, 0.0
    %v971 = vmax.f32 %v911, 0.0
    %v972 = vmax.f32 %v916, 0.0
    %v973 = vmax.f32 %v919, 0.0
    %v974 = vmax.f32 %v924, 0.0
    %v975 = vmax.f32 %v927, 0.0
    %v976 = vmax.f32 %v932, 0.0
    %v977 = vmax.f32 %v935, 0.0
    %v978 = vmax.f32 %v940, 0.0
    %v979 = vmax.f32 %v943, 0.0
    %v980 = vmax.f32 %v948, 0.0
    %v981 = vmax.f32 %v951, 0.0
    %v982 = vmax.f32 %v956, 0.0
    %v983 = vmax.f32 %v959, 0.0
    %v984 = vmax.f32 %v964, 0.0
    %v985 = vmax.f32 %v967, 0.0
    %v986 = vrot.slane %v970, 6
    %v987 = vrot.slane %v971, 6
    %v988 = vrot.slane %v972, 6
    %v989 = vrot.slane %v973, 6
    %v990 = vrot.slane %v974, 6
    %v991 = vrot.slane %v975, 6
    %v992 = vrot.slane %v976, 6
    %v993 = vrot.slane %v977, 6
    %v994 = vrot.slane %v978, 6
    %v995 = vrot.slane %v979, 6
    %v996 = vrot.slane %v980, 6
    %v997 = vrot.slane %v981, 6
    %v998 = vrot.slane %v982, 6
    %v999 = vrot.slane %v983, 6
    %v1000 = vrot.slane %v984, 6
    %v1001 = vrot.slane %v985, 6
    %v1002 = vsel %vm447, %v1000, %v1001
    %v1003 = vsel %vm447, %v999, %v1000
    %v1004 = vsel %vm447, %v998, %v999
    %v1005 = vsel %vm447, %v997, %v998
    %v1006 = vsel %vm447, %v996, %v997
    %v1007 = vsel %vm447, %v995, %v996
    %v1008 = vsel %vm447, %v994, %v995
    %v1009 = vsel %vm447, %v993, %v994
    %v1010 = vsel %vm447, %v992, %v993
    %v1011 = vsel %vm447, %v991, %v992
    %v1012 = vsel %vm447, %v990, %v991
    %v1013 = vsel %vm447, %v989, %v990
    %v1014 = vsel %vm447, %v988, %v989
    %v1015 = vsel %vm447, %v987, %v988
    %v1016 = vsel %vm447, %v986, %v987
    %v1017 = vsel %vm447, %v1001, %v986
    %v1018 = vsel %vm496, %v1017, 0.0
    %v1019 = vsel %vm497, %v1016, 0.0
    %v1020 = vsel %vm498, %v1015, 0.0
    %v1021 = vsel %vm499, %v1014, 0.0
    %v1022 = vsel %vm500, %v1013, 0.0
    %v1023 = vsel %vm501, %v1012, 0.0
    %v1024 = vsel %vm502, %v1011, 0.0
    %v1025 = vsel %vm503, %v1010, 0.0
    %v1026 = vsel %vm504, %v1009, 0.0
    %v1027 = vsel %vm505, %v1008, 0.0
    %v1028 = vsel %vm506, %v1007, 0.0
    %v1029 = vsel %vm507, %v1006, 0.0
    %v1030 = vsel %vm508, %v1005, 0.0
    %v1031 = vsel %vm509, %v1004, 0.0
    %v1032 = vsel %vm510, %v1003, 0.0
    %v1033 = vsel %vm511, %v1002, 0.0
    %v1034 = vrot.slane %v970, 7
    %v1035 = vrot.slane %v971, 7
    %v1036 = vrot.slane %v972, 7
    %v1037 = vrot.slane %v973, 7
    %v1038 = vrot.slane %v974, 7
    %v1039 = vrot.slane %v975, 7
    %v1040 = vrot.slane %v976, 7
    %v1041 = vrot.slane %v977, 7
    %v1042 = vrot.slane %v978, 7
    %v1043 = vrot.slane %v979, 7
    %v1044 = vrot.slane %v980, 7
    %v1045 = vrot.slane %v981, 7
    %v1046 = vrot.slane %v982, 7
    %v1047 = vrot.slane %v983, 7
    %v1048 = vrot.slane %v984, 7
    %v1049 = vrot.slane %v985, 7
    %v1050 = vsel %vm544, %v1048, %v1049
    %v1051 = vsel %vm544, %v1047, %v1048
    %v1052 = vsel %vm544, %v1046, %v1047
    %v1053 = vsel %vm544, %v1045, %v1046
    %v1054 = vsel %vm544, %v1044, %v1045
    %v1055 = vsel %vm544, %v1043, %v1044
    %v1056 = vsel %vm544, %v1042, %v1043
    %v1057 = vsel %vm544, %v1041, %v1042
    %v1058 = vsel %vm544, %v1040, %v1041
    %v1059 = vsel %vm544, %v1039, %v1040
    %v1060 = vsel %vm544, %v1038, %v1039
    %v1061 = vsel %vm544, %v1037, %v1038
    %v1062 = vsel %vm544, %v1036, %v1037
    %v1063 = vsel %vm544, %v1035, %v1036
    %v1064 = vsel %vm544, %v1034, %v1035
    %v1065 = vsel %vm544, %v1049, %v1034
    %v1066 = vsel %vm593, %v1065, 0.0
    %v1067 = vsel %vm594, %v1064, 0.0
    %v1068 = vsel %vm595, %v1063, 0.0
    %v1069 = vsel %vm596, %v1062, 0.0
    %v1070 = vsel %vm597, %v1061, 0.0
    %v1071 = vsel %vm598, %v1060, 0.0
    %v1072 = vsel %vm599, %v1059, 0.0
    %v1073 = vsel %vm600, %v1058, 0.0
    %v1074 = vsel %vm601, %v1057, 0.0
    %v1075 = vsel %vm602, %v1056, 0.0
    %v1076 = vsel %vm603, %v1055, 0.0
    %v1077 = vsel %vm604, %v1054, 0.0
    %v1078 = vsel %vm605, %v1053, 0.0
    %v1079 = vsel %vm606, %v1052, 0.0
    %v1080 = vsel %vm607, %v1051, 0.0
    %v1081 = vsel %vm608, %v1050, 0.0
    %1098 = vrot.lane.b32.xlu0 %v1066, 64
    %v1099 = vpop.permute.xlu0 %1098
    %1100 = vrot.lane.b32.xlu0 %v1067, 64
    %v1101 = vpop.permute.xlu0 %1100
    %1102 = vrot.lane.b32.xlu0 %v1068, 64
    %v1103 = vpop.permute.xlu0 %1102
    %1104 = vrot.lane.b32.xlu0 %v1069, 64
    %v1105 = vpop.permute.xlu0 %1104
    %1106 = vrot.lane.b32.xlu0 %v1070, 64
    %v1107 = vpop.permute.xlu0 %1106
    %1108 = vrot.lane.b32.xlu0 %v1071, 64
    %v1109 = vpop.permute.xlu0 %1108
    %1110 = vrot.lane.b32.xlu0 %v1072, 64
    %v1111 = vpop.permute.xlu0 %1110
    %1112 = vrot.lane.b32.xlu0 %v1073, 64
    %v1113 = vpop.permute.xlu0 %1112
    %1114 = vrot.lane.b32.xlu0 %v1074, 64
    %v1115 = vpop.permute.xlu0 %1114
    %1116 = vrot.lane.b32.xlu0 %v1075, 64
    %v1117 = vpop.permute.xlu0 %1116
    %1118 = vrot.lane.b32.xlu0 %v1076, 64
    %v1119 = vpop.permute.xlu0 %1118
    %1120 = vrot.lane.b32.xlu0 %v1077, 64
    %v1121 = vpop.permute.xlu0 %1120
    %1122 = vrot.lane.b32.xlu0 %v1078, 64
    %v1123 = vpop.permute.xlu0 %1122
    %1124 = vrot.lane.b32.xlu0 %v1079, 64
    %v1125 = vpop.permute.xlu0 %1124
    %1126 = vrot.lane.b32.xlu0 %v1080, 64
    %v1127 = vpop.permute.xlu0 %1126
    %1128 = vrot.lane.b32.xlu0 %v1081, 64
    %v1129 = vpop.permute.xlu0 %1128
    %v1146 = vsel %vm770, %v1018, %v1099
    %v1147 = vsel %vm770, %v1019, %v1101
    %v1148 = vsel %vm770, %v1020, %v1103
    %v1149 = vsel %vm770, %v1021, %v1105
    %v1150 = vsel %vm770, %v1022, %v1107
    %v1151 = vsel %vm770, %v1023, %v1109
    %v1152 = vsel %vm770, %v1024, %v1111
    %v1153 = vsel %vm770, %v1025, %v1113
    %v1154 = vsel %vm770, %v1026, %v1115
    %v1155 = vsel %vm770, %v1027, %v1117
    %v1156 = vsel %vm770, %v1028, %v1119
    %v1157 = vsel %vm770, %v1029, %v1121
    %v1158 = vsel %vm770, %v1030, %v1123
    %v1159 = vsel %vm770, %v1031, %v1125
    %v1160 = vsel %vm770, %v1032, %v1127
    %v1161 = vsel %vm770, %v1033, %v1129
    %v1162 = vpack.c.bf16 %v1147, %v1146
    %v1163 = vpack.c.bf16 %v971, %v970
    %v1164 = vpack.c.bf16 %v1149, %v1148
    %v1165 = vpack.c.bf16 %v973, %v972
    %v1166 = vpack.c.bf16 %v1151, %v1150
    %v1167 = vpack.c.bf16 %v975, %v974
    %v1168 = vpack.c.bf16 %v1153, %v1152
    %v1169 = vpack.c.bf16 %v977, %v976
    %v1170 = vpack.c.bf16 %v1155, %v1154
    %v1171 = vpack.c.bf16 %v979, %v978
    %v1172 = vpack.c.bf16 %v1157, %v1156
    %v1173 = vpack.c.bf16 %v981, %v980
    %v1174 = vpack.c.bf16 %v1159, %v1158
    %v1175 = vpack.c.bf16 %v983, %v982
    %v1176 = vpack.c.bf16 %v1161, %v1160
    %v1177 = vpack.c.bf16 %v985, %v984
    %v1178 = vld [vmem:[%s4] sm:$0xf]
    %v1179 = vld [vmem:[%s4 + $0x4] sm:$0xf]
    %v1180 = vld [vmem:[%s4 + $0x8] sm:$0xf]
    %v1181 = vld [vmem:[%s4 + $0xc] sm:$0xf]
    %v1182 = vld [vmem:[%s4 + $0x10] sm:$0xf]
    %v1183 = vld [vmem:[%s4 + $0x14] sm:$0xf]
    %v1184 = vld [vmem:[%s4 + $0x18] sm:$0xf]
    %v1185 = vld [vmem:[%s4 + $0x1c] sm:$0xf]
    %v1186 = vld [vmem:[%s4 + $0x20] sm:$0xf]
    %v1187 = vld [vmem:[%s4 + $0x24] sm:$0xf]
    %v1188 = vld [vmem:[%s4 + $0x28] sm:$0xf]
    %v1189 = vld [vmem:[%s4 + $0x2c] sm:$0xf]
    %v1190 = vld [vmem:[%s4 + $0x30] sm:$0xf]
    %v1191 = vld [vmem:[%s4 + $0x34] sm:$0xf]
    %v1192 = vld [vmem:[%s4 + $0x38] sm:$0xf]
    %v1193 = vld [vmem:[%s4 + $0x3c] sm:$0xf]
    %v1194 = vld [vmem:[%s4 + $0x40] sm:$0xf]
    %v1195 = vld [vmem:[%s4 + $0x44] sm:$0xf]
    %v1196 = vld [vmem:[%s4 + $0x48] sm:$0xf]
    %v1197 = vld [vmem:[%s4 + $0x4c] sm:$0xf]
    %v1198 = vld [vmem:[%s4 + $0x50] sm:$0xf]
    %v1199 = vld [vmem:[%s4 + $0x54] sm:$0xf]
    %v1200 = vld [vmem:[%s4 + $0x58] sm:$0xf]
    %v1201 = vld [vmem:[%s4 + $0x5c] sm:$0xf]
    %v1202 = vld [vmem:[%s2 + $0x2] sm:$0x1]
    %v1203 = vlaneseq
    %v1204 = vshrl.u32 %v1203, 7
    %v1205 = vsub.s32 0, %v1204
    %v1206 = vrot.slane %v1202, %v1205
    %v1231 = vunpack.c.l.b16 %v1178
    %v1232 = vunpack.c.l.b16 %v1179
    %v1233 = vunpack.c.l.b16 %v1180
    %v1234 = vunpack.c.l.b16 %v1181
    %v1235 = vunpack.c.l.b16 %v1182
    %v1236 = vunpack.c.l.b16 %v1183
    %v1237 = vunpack.c.l.b16 %v1184
    %v1238 = vunpack.c.l.b16 %v1185
    %v1239 = vunpack.c.l.b16 %v1186
    %v1240 = vunpack.c.l.b16 %v1187
    %v1241 = vunpack.c.l.b16 %v1188
    %v1242 = vunpack.c.l.b16 %v1189
    %v1243 = vunpack.c.l.b16 %v1190
    %v1244 = vunpack.c.l.b16 %v1191
    %v1245 = vunpack.c.l.b16 %v1192
    %v1246 = vunpack.c.l.b16 %v1193
    %v1247 = vunpack.c.l.b16 %v1194
    %v1248 = vunpack.c.l.b16 %v1195
    %v1249 = vunpack.c.l.b16 %v1196
    %v1250 = vunpack.c.l.b16 %v1197
    %v1251 = vunpack.c.l.b16 %v1198
    %v1252 = vunpack.c.l.b16 %v1199
    %v1253 = vunpack.c.l.b16 %v1200
    %v1254 = vunpack.c.l.b16 %v1201
    %v1255 = vpack.c.b16 %v1232, %v1231
    %v1256 = vpack.c.b16 %v1234, %v1233
    %v1257 = vpack.c.b16 %v1236, %v1235
    %v1258 = vpack.c.b16 %v1238, %v1237
    %v1259 = vpack.c.b16 %v1240, %v1239
    %v1260 = vpack.c.b16 %v1242, %v1241
    %v1261 = vpack.c.b16 %v1244, %v1243
    %v1262 = vpack.c.b16 %v1246, %v1245
    %v1263 = vpack.c.b16 %v1248, %v1247
    %v1264 = vpack.c.b16 %v1250, %v1249
    %v1265 = vpack.c.b16 %v1252, %v1251
    %v1266 = vpack.c.b16 %v1254, %v1253
    %v1280 = vsel %vm770, %v1163, 0
    %v1283 = vsel %vm770, %v1165, 0
    %v1286 = vsel %vm770, %v1167, 0
    %v1289 = vsel %vm770, %v1169, 0
    %v1292 = vsel %vm770, %v1171, 0
    %v1295 = vsel %vm770, %v1173, 0
    %v1298 = vsel %vm770, %v1175, 0
    %v1301 = vsel %vm770, %v1177, 0
    %1303 = vmatprep.subr.bf16.mxu0 0
    %1304 = vmatpush1.bf16.msra.mxu0 %v1262
    %1305 = vmatprep.subr.bf16.mxu0 0
    %1306 = vmatpush1.bf16.msra.mxu0 %v1261
    %1307 = vmatprep.subr.bf16.mxu0 0
    %1308 = vmatpush1.bf16.msra.mxu0 %v1260
    %1309 = vmatprep.subr.bf16.mxu0 0
    %1310 = vmatpush1.bf16.msra.mxu0 %v1259
    %1311 = vmatprep.subr.bf16.mxu0 0
    %1312 = vmatpush1.bf16.msra.mxu0 %v1258
    %1313 = vmatprep.subr.bf16.mxu0 0
    %1314 = vmatpush1.bf16.msra.mxu0 %v1257
    %1315 = vmatprep.subr.bf16.mxu0 0
    %1316 = vmatpush1.bf16.msra.mxu0 %v1256
    %1317 = vmatprep.subr.bf16.mxu0 0
    %1318 = vmatpush1.bf16.msra.mxu0 %v1255
    %1319 = vmatprep.subr.bf16.mxu0 0
    %1320 = vmatpush2.bf16.msra.mxu0 0
    %1321 = vmatprep.subr.bf16.mxu0 0
    %1322 = vmatpush2.bf16.msra.mxu0 0
    %1323 = vmatprep.subr.bf16.mxu0 0
    %1324 = vmatpush2.bf16.msra.mxu0 0
    %1325 = vmatprep.subr.bf16.mxu0 0
    %1326 = vmatpush2.bf16.msra.mxu0 0
    %1327 = vmatprep.subr.bf16.mxu0 0
    %1328 = vmatpush2.bf16.msra.mxu0 %v1266
    %1329 = vmatprep.subr.bf16.mxu0 0
    %1330 = vmatpush2.bf16.msra.mxu0 %v1265
    %1331 = vmatprep.subr.bf16.mxu0 0
    %1332 = vmatpush2.bf16.msra.mxu0 %v1264
    %1333 = vmatprep.subr.bf16.mxu0 0
    %1334 = vmatpush2.bf16.msra.mxu0 %v1263
    %1335 = vmatprep.mubr.bf16.mxu0 %v1280
    %1336 = vmatmul.mubr.bf16.gmra.mxu0 %v1162
    %v1337 = vpop.f32.mrf.mxu0
    %v1338 = vadd.f32 %v1206, %v1337
    %v1339 = vpop.f32.mrf.mxu0
    %v1340 = vpop.f32.mrf.mxu0
    %v1341 = vadd.f32 %v1206, %v1340
    %v1342 = vpop.f32.mrf.mxu0
    %1343 = vmatprep.mubr.bf16.mxu0 %v1283
    %1344 = vmatmul.mubr.bf16.gmra.mxu0 %v1164
    %v1345 = vpop.f32.mrf.mxu0
    %v1346 = vadd.f32 %v1206, %v1345
    %v1347 = vpop.f32.mrf.mxu0
    %v1348 = vpop.f32.mrf.mxu0
    %v1349 = vadd.f32 %v1206, %v1348
    %v1350 = vpop.f32.mrf.mxu0
    %1351 = vmatprep.mubr.bf16.mxu0 %v1286
    %1352 = vmatmul.mubr.bf16.gmra.mxu0 %v1166
    %v1353 = vpop.f32.mrf.mxu0
    %v1354 = vadd.f32 %v1206, %v1353
    %v1355 = vpop.f32.mrf.mxu0
    %v1356 = vpop.f32.mrf.mxu0
    %v1357 = vadd.f32 %v1206, %v1356
    %v1358 = vpop.f32.mrf.mxu0
    %1359 = vmatprep.mubr.bf16.mxu0 %v1289
    %1360 = vmatmul.mubr.bf16.gmra.mxu0 %v1168
    %v1361 = vpop.f32.mrf.mxu0
    %v1362 = vadd.f32 %v1206, %v1361
    %v1363 = vpop.f32.mrf.mxu0
    %v1364 = vpop.f32.mrf.mxu0
    %v1365 = vadd.f32 %v1206, %v1364
    %v1366 = vpop.f32.mrf.mxu0
    %1367 = vmatprep.mubr.bf16.mxu0 %v1292
    %1368 = vmatmul.mubr.bf16.gmra.mxu0 %v1170
    %v1369 = vpop.f32.mrf.mxu0
    %v1370 = vadd.f32 %v1206, %v1369
    %v1371 = vpop.f32.mrf.mxu0
    %v1372 = vpop.f32.mrf.mxu0
    %v1373 = vadd.f32 %v1206, %v1372
    %v1374 = vpop.f32.mrf.mxu0
    %1375 = vmatprep.mubr.bf16.mxu0 %v1295
    %1376 = vmatmul.mubr.bf16.gmra.mxu0 %v1172
    %v1377 = vpop.f32.mrf.mxu0
    %v1378 = vadd.f32 %v1206, %v1377
    %v1379 = vpop.f32.mrf.mxu0
    %v1380 = vpop.f32.mrf.mxu0
    %v1381 = vadd.f32 %v1206, %v1380
    %v1382 = vpop.f32.mrf.mxu0
    %1383 = vmatprep.mubr.bf16.mxu0 %v1298
    %1384 = vmatmul.mubr.bf16.gmra.mxu0 %v1174
    %v1385 = vpop.f32.mrf.mxu0
    %v1386 = vadd.f32 %v1206, %v1385
    %v1387 = vpop.f32.mrf.mxu0
    %v1388 = vpop.f32.mrf.mxu0
    %v1389 = vadd.f32 %v1206, %v1388
    %v1390 = vpop.f32.mrf.mxu0
    %1391 = vmatprep.mubr.bf16.mxu0 %v1301
    %1392 = vmatmul.mubr.bf16.gmra.mxu0 %v1176
    %v1393 = vpop.f32.mrf.mxu0
    %v1394 = vadd.f32 %v1206, %v1393
    %v1395 = vpop.f32.mrf.mxu0
    %v1396 = vpop.f32.mrf.mxu0
    %v1397 = vadd.f32 %v1206, %v1396
    %v1398 = vpop.f32.mrf.mxu0
    %1399 = vdwg.mxu0
    %v1400 = vmax.f32 %v1338, 0.0
    %v1401 = vmax.f32 %v1341, 0.0
    %v1402 = vmax.f32 %v1346, 0.0
    %v1403 = vmax.f32 %v1349, 0.0
    %v1404 = vmax.f32 %v1354, 0.0
    %v1405 = vmax.f32 %v1357, 0.0
    %v1406 = vmax.f32 %v1362, 0.0
    %v1407 = vmax.f32 %v1365, 0.0
    %v1408 = vmax.f32 %v1370, 0.0
    %v1409 = vmax.f32 %v1373, 0.0
    %v1410 = vmax.f32 %v1378, 0.0
    %v1411 = vmax.f32 %v1381, 0.0
    %v1412 = vmax.f32 %v1386, 0.0
    %v1413 = vmax.f32 %v1389, 0.0
    %v1414 = vmax.f32 %v1394, 0.0
    %v1415 = vmax.f32 %v1397, 0.0
    %v1416 = vpack.c.bf16 %v372, %v369
    %v1417 = vpack.c.bf16 %v380, %v377
    %v1418 = vpack.c.bf16 %v388, %v385
    %v1419 = vpack.c.bf16 %v396, %v393
    %v1420 = vpack.c.bf16 %v404, %v401
    %v1421 = vpack.c.bf16 %v412, %v409
    %v1422 = vpack.c.bf16 %v420, %v417
    %v1423 = vpack.c.bf16 %v428, %v425
    %v1424 = vld [vmem:[%s5] sm:$0xf]
    %v1425 = vld [vmem:[%s5 + $0x4] sm:$0xf]
    %v1426 = vld [vmem:[%s5 + $0x8] sm:$0xf]
    %v1427 = vld [vmem:[%s5 + $0xc] sm:$0xf]
    %v1428 = vld [vmem:[%s2 + $0x3] sm:$0x1]
    %v1429 = vlaneseq
    %v1430 = vshrl.u32 %v1429, 7
    %v1431 = vsub.s32 0, %v1430
    %v1432 = vrot.slane %v1428, %v1431
    %v1437 = vunpack.c.l.b16 %v1424
    %v1438 = vunpack.c.l.b16 %v1425
    %v1439 = vunpack.c.l.b16 %v1426
    %v1440 = vunpack.c.l.b16 %v1427
    %v1441 = vpack.c.b16 %v1438, %v1437
    %v1442 = vpack.c.b16 %v1440, %v1439
    %v1446 = vsel %vm753, %v1416, 0
    %v1449 = vsel %vm753, %v1417, 0
    %v1452 = vsel %vm753, %v1418, 0
    %v1455 = vsel %vm753, %v1419, 0
    %v1458 = vsel %vm753, %v1420, 0
    %v1461 = vsel %vm753, %v1421, 0
    %v1464 = vsel %vm753, %v1422, 0
    %v1467 = vsel %vm753, %v1423, 0
    %1469 = vmatprep.subr.bf16.mxu0 0
    %1470 = vmatpush1.bf16.msra.mxu0 0
    %1471 = vmatprep.subr.bf16.mxu0 0
    %1472 = vmatpush1.bf16.msra.mxu0 0
    %1473 = vmatprep.subr.bf16.mxu0 0
    %1474 = vmatpush1.bf16.msra.mxu0 0
    %1475 = vmatprep.subr.bf16.mxu0 0
    %1476 = vmatpush1.bf16.msra.mxu0 0
    %1477 = vmatprep.subr.bf16.mxu0 0
    %1478 = vmatpush1.bf16.msra.mxu0 0
    %1479 = vmatprep.subr.bf16.mxu0 0
    %1480 = vmatpush1.bf16.msra.mxu0 0
    %1481 = vmatprep.subr.bf16.mxu0 0
    %1482 = vmatpush1.bf16.msra.mxu0 %v1442
    %1483 = vmatprep.subr.bf16.mxu0 0
    %1484 = vmatpush1.bf16.msra.mxu0 %v1441
    %1485 = vmatprep.subr.bf16.mxu0 0
    %1486 = vmatpush2.bf16.msra.mxu0 0
    %1487 = vmatprep.subr.bf16.mxu0 0
    %1488 = vmatpush2.bf16.msra.mxu0 0
    %1489 = vmatprep.subr.bf16.mxu0 0
    %1490 = vmatpush2.bf16.msra.mxu0 0
    %1491 = vmatprep.subr.bf16.mxu0 0
    %1492 = vmatpush2.bf16.msra.mxu0 0
    %1493 = vmatprep.subr.bf16.mxu0 0
    %1494 = vmatpush2.bf16.msra.mxu0 0
    %1495 = vmatprep.subr.bf16.mxu0 0
    %1496 = vmatpush2.bf16.msra.mxu0 0
    %1497 = vmatprep.subr.bf16.mxu0 0
    %1498 = vmatpush2.bf16.msra.mxu0 0
    %1499 = vmatprep.subr.bf16.mxu0 0
    %1500 = vmatpush2.bf16.msra.mxu0 0
    %1501 = vmatprep.mubr.bf16.mxu0 0
    %1502 = vmatmul.mubr.bf16.gmra.mxu0 %v1446
    %v1503 = vpop.f32.mrf.mxu0
    %v1504 = vadd.f32 %v1432, %v1503
    %v1505 = vpop.f32.mrf.mxu0
    %v1506 = vpop.f32.mrf.mxu0
    %v1507 = vadd.f32 %v1432, %v1506
    %v1508 = vpop.f32.mrf.mxu0
    %1509 = vmatprep.mubr.bf16.mxu0 0
    %1510 = vmatmul.mubr.bf16.gmra.mxu0 %v1449
    %v1511 = vpop.f32.mrf.mxu0
    %v1512 = vadd.f32 %v1432, %v1511
    %v1513 = vpop.f32.mrf.mxu0
    %v1514 = vpop.f32.mrf.mxu0
    %v1515 = vadd.f32 %v1432, %v1514
    %v1516 = vpop.f32.mrf.mxu0
    %1517 = vmatprep.mubr.bf16.mxu0 0
    %1518 = vmatmul.mubr.bf16.gmra.mxu0 %v1452
    %v1519 = vpop.f32.mrf.mxu0
    %v1520 = vadd.f32 %v1432, %v1519
    %v1521 = vpop.f32.mrf.mxu0
    %v1522 = vpop.f32.mrf.mxu0
    %v1523 = vadd.f32 %v1432, %v1522
    %v1524 = vpop.f32.mrf.mxu0
    %1525 = vmatprep.mubr.bf16.mxu0 0
    %1526 = vmatmul.mubr.bf16.gmra.mxu0 %v1455
    %v1527 = vpop.f32.mrf.mxu0
    %v1528 = vadd.f32 %v1432, %v1527
    %v1529 = vpop.f32.mrf.mxu0
    %v1530 = vpop.f32.mrf.mxu0
    %v1531 = vadd.f32 %v1432, %v1530
    %v1532 = vpop.f32.mrf.mxu0
    %1533 = vmatprep.mubr.bf16.mxu0 0
    %1534 = vmatmul.mubr.bf16.gmra.mxu0 %v1458
    %v1535 = vpop.f32.mrf.mxu0
    %v1536 = vadd.f32 %v1432, %v1535
    %v1537 = vpop.f32.mrf.mxu0
    %v1538 = vpop.f32.mrf.mxu0
    %v1539 = vadd.f32 %v1432, %v1538
    %v1540 = vpop.f32.mrf.mxu0
    %1541 = vmatprep.mubr.bf16.mxu0 0
    %1542 = vmatmul.mubr.bf16.gmra.mxu0 %v1461
    %v1543 = vpop.f32.mrf.mxu0
    %v1544 = vadd.f32 %v1432, %v1543
    %v1545 = vpop.f32.mrf.mxu0
    %v1546 = vpop.f32.mrf.mxu0
    %v1547 = vadd.f32 %v1432, %v1546
    %v1548 = vpop.f32.mrf.mxu0
    %1549 = vmatprep.mubr.bf16.mxu0 0
    %1550 = vmatmul.mubr.bf16.gmra.mxu0 %v1464
    %v1551 = vpop.f32.mrf.mxu0
    %v1552 = vadd.f32 %v1432, %v1551
    %v1553 = vpop.f32.mrf.mxu0
    %v1554 = vpop.f32.mrf.mxu0
    %v1555 = vadd.f32 %v1432, %v1554
    %v1556 = vpop.f32.mrf.mxu0
    %1557 = vmatprep.mubr.bf16.mxu0 0
    %1558 = vmatmul.mubr.bf16.gmra.mxu0 %v1467
    %v1559 = vpop.f32.mrf.mxu0
    %v1560 = vadd.f32 %v1432, %v1559
    %v1561 = vpop.f32.mrf.mxu0
    %v1562 = vpop.f32.mrf.mxu0
    %v1563 = vadd.f32 %v1432, %v1562
    %v1564 = vpop.f32.mrf.mxu0
    %1565 = vdwg.mxu0
    %v1566 = vadd.f32 %v1400, %v1504
    %v1567 = vadd.f32 %v1401, %v1507
    %v1568 = vadd.f32 %v1402, %v1512
    %v1569 = vadd.f32 %v1403, %v1515
    %v1570 = vadd.f32 %v1404, %v1520
    %v1571 = vadd.f32 %v1405, %v1523
    %v1572 = vadd.f32 %v1406, %v1528
    %v1573 = vadd.f32 %v1407, %v1531
    %v1574 = vadd.f32 %v1408, %v1536
    %v1575 = vadd.f32 %v1409, %v1539
    %v1576 = vadd.f32 %v1410, %v1544
    %v1577 = vadd.f32 %v1411, %v1547
    %v1578 = vadd.f32 %v1412, %v1552
    %v1579 = vadd.f32 %v1413, %v1555
    %v1580 = vadd.f32 %v1414, %v1560
    %v1581 = vadd.f32 %v1415, %v1563
    %v1582 = vmax.f32 %v1566, 0.0
    %v1583 = vmax.f32 %v1567, 0.0
    %v1584 = vmax.f32 %v1568, 0.0
    %v1585 = vmax.f32 %v1569, 0.0
    %v1586 = vmax.f32 %v1570, 0.0
    %v1587 = vmax.f32 %v1571, 0.0
    %v1588 = vmax.f32 %v1572, 0.0
    %v1589 = vmax.f32 %v1573, 0.0
    %v1590 = vmax.f32 %v1574, 0.0
    %v1591 = vmax.f32 %v1575, 0.0
    %v1592 = vmax.f32 %v1576, 0.0
    %v1593 = vmax.f32 %v1577, 0.0
    %v1594 = vmax.f32 %v1578, 0.0
    %v1595 = vmax.f32 %v1579, 0.0
    %v1596 = vmax.f32 %v1580, 0.0
    %v1597 = vmax.f32 %v1581, 0.0
    %v1598 = vrot.slane %v1582, 4
    %v1599 = vrot.slane %v1583, 4
    %v1600 = vrot.slane %v1584, 4
    %v1601 = vrot.slane %v1585, 4
    %v1602 = vrot.slane %v1586, 4
    %v1603 = vrot.slane %v1587, 4
    %v1604 = vrot.slane %v1588, 4
    %v1605 = vrot.slane %v1589, 4
    %v1606 = vrot.slane %v1590, 4
    %v1607 = vrot.slane %v1591, 4
    %v1608 = vrot.slane %v1592, 4
    %v1609 = vrot.slane %v1593, 4
    %v1610 = vrot.slane %v1594, 4
    %v1611 = vrot.slane %v1595, 4
    %v1612 = vrot.slane %v1596, 4
    %v1613 = vrot.slane %v1597, 4
    %vm1614 = vcmp.lt.s32.totalorder %v35, 4
    %v1615 = vsel %vm1614, %v1612, %v1613
    %v1616 = vsel %vm1614, %v1611, %v1612
    %v1617 = vsel %vm1614, %v1610, %v1611
    %v1618 = vsel %vm1614, %v1609, %v1610
    %v1619 = vsel %vm1614, %v1608, %v1609
    %v1620 = vsel %vm1614, %v1607, %v1608
    %v1621 = vsel %vm1614, %v1606, %v1607
    %v1622 = vsel %vm1614, %v1605, %v1606
    %v1623 = vsel %vm1614, %v1604, %v1605
    %v1624 = vsel %vm1614, %v1603, %v1604
    %v1625 = vsel %vm1614, %v1602, %v1603
    %v1626 = vsel %vm1614, %v1601, %v1602
    %v1627 = vsel %vm1614, %v1600, %v1601
    %v1628 = vsel %vm1614, %v1599, %v1600
    %v1629 = vsel %vm1614, %v1598, %v1599
    %v1630 = vsel %vm1614, %v1613, %v1598
    %vm1631 = vcmp.ge.s32.totalorder %v227, 4
    %vm1632 = vcmp.ge.s32.totalorder %v228, 4
    %vm1633 = vcmp.ge.s32.totalorder %v229, 4
    %vm1634 = vcmp.ge.s32.totalorder %v230, 4
    %vm1635 = vcmp.ge.s32.totalorder %v231, 4
    %vm1636 = vcmp.ge.s32.totalorder %v232, 4
    %vm1637 = vcmp.ge.s32.totalorder %v233, 4
    %vm1638 = vcmp.ge.s32.totalorder %v234, 4
    %vm1639 = vcmp.ge.s32.totalorder %v235, 4
    %vm1640 = vcmp.ge.s32.totalorder %v236, 4
    %vm1641 = vcmp.ge.s32.totalorder %v237, 4
    %vm1642 = vcmp.ge.s32.totalorder %v238, 4
    %vm1643 = vcmp.ge.s32.totalorder %v239, 4
    %vm1644 = vcmp.ge.s32.totalorder %v240, 4
    %vm1645 = vcmp.ge.s32.totalorder %v241, 4
    %vm1646 = vcmp.ge.s32.totalorder %v242, 4
    %v1647 = vsel %vm1631, 1, 0
    %v1648 = vsel %vm1632, 1, 0
    %v1649 = vsel %vm1633, 1, 0
    %v1650 = vsel %vm1634, 1, 0
    %v1651 = vsel %vm1635, 1, 0
    %v1652 = vsel %vm1636, 1, 0
    %v1653 = vsel %vm1637, 1, 0
    %v1654 = vsel %vm1638, 1, 0
    %v1655 = vsel %vm1639, 1, 0
    %v1656 = vsel %vm1640, 1, 0
    %v1657 = vsel %vm1641, 1, 0
    %v1658 = vsel %vm1642, 1, 0
    %v1659 = vsel %vm1643, 1, 0
    %v1660 = vsel %vm1644, 1, 0
    %v1661 = vsel %vm1645, 1, 0
    %v1662 = vsel %vm1646, 1, 0
    %vm1663 = vcmp.eq.s32.totalorder %v1647, 1
    %vm1664 = vcmp.eq.s32.totalorder %v1648, 1
    %vm1665 = vcmp.eq.s32.totalorder %v1649, 1
    %vm1666 = vcmp.eq.s32.totalorder %v1650, 1
    %vm1667 = vcmp.eq.s32.totalorder %v1651, 1
    %vm1668 = vcmp.eq.s32.totalorder %v1652, 1
    %vm1669 = vcmp.eq.s32.totalorder %v1653, 1
    %vm1670 = vcmp.eq.s32.totalorder %v1654, 1
    %vm1671 = vcmp.eq.s32.totalorder %v1655, 1
    %vm1672 = vcmp.eq.s32.totalorder %v1656, 1
    %vm1673 = vcmp.eq.s32.totalorder %v1657, 1
    %vm1674 = vcmp.eq.s32.totalorder %v1658, 1
    %vm1675 = vcmp.eq.s32.totalorder %v1659, 1
    %vm1676 = vcmp.eq.s32.totalorder %v1660, 1
    %vm1677 = vcmp.eq.s32.totalorder %v1661, 1
    %vm1678 = vcmp.eq.s32.totalorder %v1662, 1
    %v1679 = vsel %vm1663, %v1630, 0.0
    %v1680 = vsel %vm1664, %v1629, 0.0
    %v1681 = vsel %vm1665, %v1628, 0.0
    %v1682 = vsel %vm1666, %v1627, 0.0
    %v1683 = vsel %vm1667, %v1626, 0.0
    %v1684 = vsel %vm1668, %v1625, 0.0
    %v1685 = vsel %vm1669, %v1624, 0.0
    %v1686 = vsel %vm1670, %v1623, 0.0
    %v1687 = vsel %vm1671, %v1622, 0.0
    %v1688 = vsel %vm1672, %v1621, 0.0
    %v1689 = vsel %vm1673, %v1620, 0.0
    %v1690 = vsel %vm1674, %v1619, 0.0
    %v1691 = vsel %vm1675, %v1618, 0.0
    %v1692 = vsel %vm1676, %v1617, 0.0
    %v1693 = vsel %vm1677, %v1616, 0.0
    %v1694 = vsel %vm1678, %v1615, 0.0
    %v1695 = vrot.slane %v1582, 6
    %v1696 = vrot.slane %v1583, 6
    %v1697 = vrot.slane %v1584, 6
    %v1698 = vrot.slane %v1585, 6
    %v1699 = vrot.slane %v1586, 6
    %v1700 = vrot.slane %v1587, 6
    %v1701 = vrot.slane %v1588, 6
    %v1702 = vrot.slane %v1589, 6
    %v1703 = vrot.slane %v1590, 6
    %v1704 = vrot.slane %v1591, 6
    %v1705 = vrot.slane %v1592, 6
    %v1706 = vrot.slane %v1593, 6
    %v1707 = vrot.slane %v1594, 6
    %v1708 = vrot.slane %v1595, 6
    %v1709 = vrot.slane %v1596, 6
    %v1710 = vrot.slane %v1597, 6
    %v1711 = vsel %vm447, %v1709, %v1710
    %v1712 = vsel %vm447, %v1708, %v1709
    %v1713 = vsel %vm447, %v1707, %v1708
    %v1714 = vsel %vm447, %v1706, %v1707
    %v1715 = vsel %vm447, %v1705, %v1706
    %v1716 = vsel %vm447, %v1704, %v1705
    %v1717 = vsel %vm447, %v1703, %v1704
    %v1718 = vsel %vm447, %v1702, %v1703
    %v1719 = vsel %vm447, %v1701, %v1702
    %v1720 = vsel %vm447, %v1700, %v1701
    %v1721 = vsel %vm447, %v1699, %v1700
    %v1722 = vsel %vm447, %v1698, %v1699
    %v1723 = vsel %vm447, %v1697, %v1698
    %v1724 = vsel %vm447, %v1696, %v1697
    %v1725 = vsel %vm447, %v1695, %v1696
    %v1726 = vsel %vm447, %v1710, %v1695
    %v1727 = vsel %vm496, %v1726, 0.0
    %v1728 = vsel %vm497, %v1725, 0.0
    %v1729 = vsel %vm498, %v1724, 0.0
    %v1730 = vsel %vm499, %v1723, 0.0
    %v1731 = vsel %vm500, %v1722, 0.0
    %v1732 = vsel %vm501, %v1721, 0.0
    %v1733 = vsel %vm502, %v1720, 0.0
    %v1734 = vsel %vm503, %v1719, 0.0
    %v1735 = vsel %vm504, %v1718, 0.0
    %v1736 = vsel %vm505, %v1717, 0.0
    %v1737 = vsel %vm506, %v1716, 0.0
    %v1738 = vsel %vm507, %v1715, 0.0
    %v1739 = vsel %vm508, %v1714, 0.0
    %v1740 = vsel %vm509, %v1713, 0.0
    %v1741 = vsel %vm510, %v1712, 0.0
    %v1742 = vsel %vm511, %v1711, 0.0
    %1759 = vrot.lane.b32.xlu0 %v1727, 64
    %v1760 = vpop.permute.xlu0 %1759
    %1761 = vrot.lane.b32.xlu0 %v1728, 64
    %v1762 = vpop.permute.xlu0 %1761
    %1763 = vrot.lane.b32.xlu0 %v1729, 64
    %v1764 = vpop.permute.xlu0 %1763
    %1765 = vrot.lane.b32.xlu0 %v1730, 64
    %v1766 = vpop.permute.xlu0 %1765
    %1767 = vrot.lane.b32.xlu0 %v1731, 64
    %v1768 = vpop.permute.xlu0 %1767
    %1769 = vrot.lane.b32.xlu0 %v1732, 64
    %v1770 = vpop.permute.xlu0 %1769
    %1771 = vrot.lane.b32.xlu0 %v1733, 64
    %v1772 = vpop.permute.xlu0 %1771
    %1773 = vrot.lane.b32.xlu0 %v1734, 64
    %v1774 = vpop.permute.xlu0 %1773
    %1775 = vrot.lane.b32.xlu0 %v1735, 64
    %v1776 = vpop.permute.xlu0 %1775
    %1777 = vrot.lane.b32.xlu0 %v1736, 64
    %v1778 = vpop.permute.xlu0 %1777
    %1779 = vrot.lane.b32.xlu0 %v1737, 64
    %v1780 = vpop.permute.xlu0 %1779
    %1781 = vrot.lane.b32.xlu0 %v1738, 64
    %v1782 = vpop.permute.xlu0 %1781
    %1783 = vrot.lane.b32.xlu0 %v1739, 64
    %v1784 = vpop.permute.xlu0 %1783
    %1785 = vrot.lane.b32.xlu0 %v1740, 64
    %v1786 = vpop.permute.xlu0 %1785
    %1787 = vrot.lane.b32.xlu0 %v1741, 64
    %v1788 = vpop.permute.xlu0 %1787
    %1789 = vrot.lane.b32.xlu0 %v1742, 64
    %v1790 = vpop.permute.xlu0 %1789
    %v1807 = vsel %vm770, %v1679, %v1760
    %v1808 = vsel %vm770, %v1680, %v1762
    %v1809 = vsel %vm770, %v1681, %v1764
    %v1810 = vsel %vm770, %v1682, %v1766
    %v1811 = vsel %vm770, %v1683, %v1768
    %v1812 = vsel %vm770, %v1684, %v1770
    %v1813 = vsel %vm770, %v1685, %v1772
    %v1814 = vsel %vm770, %v1686, %v1774
    %v1815 = vsel %vm770, %v1687, %v1776
    %v1816 = vsel %vm770, %v1688, %v1778
    %v1817 = vsel %vm770, %v1689, %v1780
    %v1818 = vsel %vm770, %v1690, %v1782
    %v1819 = vsel %vm770, %v1691, %v1784
    %v1820 = vsel %vm770, %v1692, %v1786
    %v1821 = vsel %vm770, %v1693, %v1788
    %v1822 = vsel %vm770, %v1694, %v1790
    %v1823 = vpack.c.bf16 %v1808, %v1807
    %v1824 = vpack.c.bf16 %v1583, %v1582
    %v1825 = vpack.c.bf16 %v1810, %v1809
    %v1826 = vpack.c.bf16 %v1585, %v1584
    %v1827 = vpack.c.bf16 %v1812, %v1811
    %v1828 = vpack.c.bf16 %v1587, %v1586
    %v1829 = vpack.c.bf16 %v1814, %v1813
    %v1830 = vpack.c.bf16 %v1589, %v1588
    %v1831 = vpack.c.bf16 %v1816, %v1815
    %v1832 = vpack.c.bf16 %v1591, %v1590
    %v1833 = vpack.c.bf16 %v1818, %v1817
    %v1834 = vpack.c.bf16 %v1593, %v1592
    %v1835 = vpack.c.bf16 %v1820, %v1819
    %v1836 = vpack.c.bf16 %v1595, %v1594
    %v1837 = vpack.c.bf16 %v1822, %v1821
    %v1838 = vpack.c.bf16 %v1597, %v1596
    %v1839 = vld [vmem:[%s6] sm:$0xf]
    %v1840 = vld [vmem:[%s6 + $0x4] sm:$0xf]
    %v1841 = vld [vmem:[%s6 + $0x8] sm:$0xf]
    %v1842 = vld [vmem:[%s6 + $0xc] sm:$0xf]
    %v1843 = vld [vmem:[%s6 + $0x10] sm:$0xf]
    %v1844 = vld [vmem:[%s6 + $0x14] sm:$0xf]
    %v1845 = vld [vmem:[%s6 + $0x18] sm:$0xf]
    %v1846 = vld [vmem:[%s6 + $0x1c] sm:$0xf]
    %v1847 = vld [vmem:[%s6 + $0x20] sm:$0xf]
    %v1848 = vld [vmem:[%s6 + $0x24] sm:$0xf]
    %v1849 = vld [vmem:[%s6 + $0x28] sm:$0xf]
    %v1850 = vld [vmem:[%s6 + $0x2c] sm:$0xf]
    %v1851 = vld [vmem:[%s6 + $0x30] sm:$0xf]
    %v1852 = vld [vmem:[%s6 + $0x34] sm:$0xf]
    %v1853 = vld [vmem:[%s6 + $0x38] sm:$0xf]
    %v1854 = vld [vmem:[%s6 + $0x3c] sm:$0xf]
    %v1855 = vld [vmem:[%s6 + $0x40] sm:$0xf]
    %v1856 = vld [vmem:[%s6 + $0x44] sm:$0xf]
    %v1857 = vld [vmem:[%s6 + $0x48] sm:$0xf]
    %v1858 = vld [vmem:[%s6 + $0x4c] sm:$0xf]
    %v1859 = vld [vmem:[%s6 + $0x50] sm:$0xf]
    %v1860 = vld [vmem:[%s6 + $0x54] sm:$0xf]
    %v1861 = vld [vmem:[%s6 + $0x58] sm:$0xf]
    %v1862 = vld [vmem:[%s6 + $0x5c] sm:$0xf]
    %v1863 = vld [vmem:[%s2 + $0x4] sm:$0x1]
    %v1864 = vlaneseq
    %v1865 = vshrl.u32 %v1864, 7
    %v1866 = vsub.s32 0, %v1865
    %v1867 = vrot.slane %v1863, %v1866
    %v1892 = vunpack.c.l.b16 %v1839
    %v1893 = vunpack.c.l.b16 %v1840
    %v1894 = vunpack.c.l.b16 %v1841
    %v1895 = vunpack.c.l.b16 %v1842
    %v1896 = vunpack.c.l.b16 %v1843
    %v1897 = vunpack.c.l.b16 %v1844
    %v1898 = vunpack.c.l.b16 %v1845
    %v1899 = vunpack.c.l.b16 %v1846
    %v1900 = vunpack.c.l.b16 %v1847
    %v1901 = vunpack.c.l.b16 %v1848
    %v1902 = vunpack.c.l.b16 %v1849
    %v1903 = vunpack.c.l.b16 %v1850
    %v1904 = vunpack.c.l.b16 %v1851
    %v1905 = vunpack.c.l.b16 %v1852
    %v1906 = vunpack.c.l.b16 %v1853
    %v1907 = vunpack.c.l.b16 %v1854
    %v1908 = vunpack.c.l.b16 %v1855
    %v1909 = vunpack.c.l.b16 %v1856
    %v1910 = vunpack.c.l.b16 %v1857
    %v1911 = vunpack.c.l.b16 %v1858
    %v1912 = vunpack.c.l.b16 %v1859
    %v1913 = vunpack.c.l.b16 %v1860
    %v1914 = vunpack.c.l.b16 %v1861
    %v1915 = vunpack.c.l.b16 %v1862
    %v1916 = vpack.c.b16 %v1893, %v1892
    %v1917 = vpack.c.b16 %v1895, %v1894
    %v1918 = vpack.c.b16 %v1897, %v1896
    %v1919 = vpack.c.b16 %v1899, %v1898
    %v1920 = vpack.c.b16 %v1901, %v1900
    %v1921 = vpack.c.b16 %v1903, %v1902
    %v1922 = vpack.c.b16 %v1905, %v1904
    %v1923 = vpack.c.b16 %v1907, %v1906
    %v1924 = vpack.c.b16 %v1909, %v1908
    %v1925 = vpack.c.b16 %v1911, %v1910
    %v1926 = vpack.c.b16 %v1913, %v1912
    %v1927 = vpack.c.b16 %v1915, %v1914
    %v1941 = vsel %vm770, %v1824, 0
    %v1944 = vsel %vm770, %v1826, 0
    %v1947 = vsel %vm770, %v1828, 0
    %v1950 = vsel %vm770, %v1830, 0
    %v1953 = vsel %vm770, %v1832, 0
    %v1956 = vsel %vm770, %v1834, 0
    %v1959 = vsel %vm770, %v1836, 0
    %v1962 = vsel %vm770, %v1838, 0
    %1964 = vmatprep.subr.bf16.mxu0 0
    %1965 = vmatpush1.bf16.msra.mxu0 %v1923
    %1966 = vmatprep.subr.bf16.mxu0 0
    %1967 = vmatpush1.bf16.msra.mxu0 %v1922
    %1968 = vmatprep.subr.bf16.mxu0 0
    %1969 = vmatpush1.bf16.msra.mxu0 %v1921
    %1970 = vmatprep.subr.bf16.mxu0 0
    %1971 = vmatpush1.bf16.msra.mxu0 %v1920
    %1972 = vmatprep.subr.bf16.mxu0 0
    %1973 = vmatpush1.bf16.msra.mxu0 %v1919
    %1974 = vmatprep.subr.bf16.mxu0 0
    %1975 = vmatpush1.bf16.msra.mxu0 %v1918
    %1976 = vmatprep.subr.bf16.mxu0 0
    %1977 = vmatpush1.bf16.msra.mxu0 %v1917
    %1978 = vmatprep.subr.bf16.mxu0 0
    %1979 = vmatpush1.bf16.msra.mxu0 %v1916
    %1980 = vmatprep.subr.bf16.mxu0 0
    %1981 = vmatpush2.bf16.msra.mxu0 0
    %1982 = vmatprep.subr.bf16.mxu0 0
    %1983 = vmatpush2.bf16.msra.mxu0 0
    %1984 = vmatprep.subr.bf16.mxu0 0
    %1985 = vmatpush2.bf16.msra.mxu0 0
    %1986 = vmatprep.subr.bf16.mxu0 0
    %1987 = vmatpush2.bf16.msra.mxu0 0
    %1988 = vmatprep.subr.bf16.mxu0 0
    %1989 = vmatpush2.bf16.msra.mxu0 %v1927
    %1990 = vmatprep.subr.bf16.mxu0 0
    %1991 = vmatpush2.bf16.msra.mxu0 %v1926
    %1992 = vmatprep.subr.bf16.mxu0 0
    %1993 = vmatpush2.bf16.msra.mxu0 %v1925
    %1994 = vmatprep.subr.bf16.mxu0 0
    %1995 = vmatpush2.bf16.msra.mxu0 %v1924
    %1996 = vmatprep.mubr.bf16.mxu0 %v1941
    %1997 = vmatmul.mubr.bf16.gmra.mxu0 %v1823
    %v1998 = vpop.f32.mrf.mxu0
    %v1999 = vadd.f32 %v1867, %v1998
    %v2000 = vpop.f32.mrf.mxu0
    %v2001 = vpop.f32.mrf.mxu0
    %v2002 = vadd.f32 %v1867, %v2001
    %v2003 = vpop.f32.mrf.mxu0
    %2004 = vmatprep.mubr.bf16.mxu0 %v1944
    %2005 = vmatmul.mubr.bf16.gmra.mxu0 %v1825
    %v2006 = vpop.f32.mrf.mxu0
    %v2007 = vadd.f32 %v1867, %v2006
    %v2008 = vpop.f32.mrf.mxu0
    %v2009 = vpop.f32.mrf.mxu0
    %v2010 = vadd.f32 %v1867, %v2009
    %v2011 = vpop.f32.mrf.mxu0
    %2012 = vmatprep.mubr.bf16.mxu0 %v1947
    %2013 = vmatmul.mubr.bf16.gmra.mxu0 %v1827
    %v2014 = vpop.f32.mrf.mxu0
    %v2015 = vadd.f32 %v1867, %v2014
    %v2016 = vpop.f32.mrf.mxu0
    %v2017 = vpop.f32.mrf.mxu0
    %v2018 = vadd.f32 %v1867, %v2017
    %v2019 = vpop.f32.mrf.mxu0
    %2020 = vmatprep.mubr.bf16.mxu0 %v1950
    %2021 = vmatmul.mubr.bf16.gmra.mxu0 %v1829
    %v2022 = vpop.f32.mrf.mxu0
    %v2023 = vadd.f32 %v1867, %v2022
    %v2024 = vpop.f32.mrf.mxu0
    %v2025 = vpop.f32.mrf.mxu0
    %v2026 = vadd.f32 %v1867, %v2025
    %v2027 = vpop.f32.mrf.mxu0
    %2028 = vmatprep.mubr.bf16.mxu0 %v1953
    %2029 = vmatmul.mubr.bf16.gmra.mxu0 %v1831
    %v2030 = vpop.f32.mrf.mxu0
    %v2031 = vadd.f32 %v1867, %v2030
    %v2032 = vpop.f32.mrf.mxu0
    %v2033 = vpop.f32.mrf.mxu0
    %v2034 = vadd.f32 %v1867, %v2033
    %v2035 = vpop.f32.mrf.mxu0
    %2036 = vmatprep.mubr.bf16.mxu0 %v1956
    %2037 = vmatmul.mubr.bf16.gmra.mxu0 %v1833
    %v2038 = vpop.f32.mrf.mxu0
    %v2039 = vadd.f32 %v1867, %v2038
    %v2040 = vpop.f32.mrf.mxu0
    %v2041 = vpop.f32.mrf.mxu0
    %v2042 = vadd.f32 %v1867, %v2041
    %v2043 = vpop.f32.mrf.mxu0
    %2044 = vmatprep.mubr.bf16.mxu0 %v1959
    %2045 = vmatmul.mubr.bf16.gmra.mxu0 %v1835
    %v2046 = vpop.f32.mrf.mxu0
    %v2047 = vadd.f32 %v1867, %v2046
    %v2048 = vpop.f32.mrf.mxu0
    %v2049 = vpop.f32.mrf.mxu0
    %v2050 = vadd.f32 %v1867, %v2049
    %v2051 = vpop.f32.mrf.mxu0
    %2052 = vmatprep.mubr.bf16.mxu0 %v1962
    %2053 = vmatmul.mubr.bf16.gmra.mxu0 %v1837
    %v2054 = vpop.f32.mrf.mxu0
    %v2055 = vadd.f32 %v1867, %v2054
    %v2056 = vpop.f32.mrf.mxu0
    %v2057 = vpop.f32.mrf.mxu0
    %v2058 = vadd.f32 %v1867, %v2057
    %v2059 = vpop.f32.mrf.mxu0
    %2060 = vdwg.mxu0
    %v2061 = vmax.f32 %v1999, 0.0
    %v2062 = vmax.f32 %v2002, 0.0
    %v2063 = vmax.f32 %v2007, 0.0
    %v2064 = vmax.f32 %v2010, 0.0
    %v2065 = vmax.f32 %v2015, 0.0
    %v2066 = vmax.f32 %v2018, 0.0
    %v2067 = vmax.f32 %v2023, 0.0
    %v2068 = vmax.f32 %v2026, 0.0
    %v2069 = vmax.f32 %v2031, 0.0
    %v2070 = vmax.f32 %v2034, 0.0
    %v2071 = vmax.f32 %v2039, 0.0
    %v2072 = vmax.f32 %v2042, 0.0
    %v2073 = vmax.f32 %v2047, 0.0
    %v2074 = vmax.f32 %v2050, 0.0
    %v2075 = vmax.f32 %v2055, 0.0
    %v2076 = vmax.f32 %v2058, 0.0
    %v2077 = vrot.slane %v2061, 4
    %v2078 = vrot.slane %v2062, 4
    %v2079 = vrot.slane %v2063, 4
    %v2080 = vrot.slane %v2064, 4
    %v2081 = vrot.slane %v2065, 4
    %v2082 = vrot.slane %v2066, 4
    %v2083 = vrot.slane %v2067, 4
    %v2084 = vrot.slane %v2068, 4
    %v2085 = vrot.slane %v2069, 4
    %v2086 = vrot.slane %v2070, 4
    %v2087 = vrot.slane %v2071, 4
    %v2088 = vrot.slane %v2072, 4
    %v2089 = vrot.slane %v2073, 4
    %v2090 = vrot.slane %v2074, 4
    %v2091 = vrot.slane %v2075, 4
    %v2092 = vrot.slane %v2076, 4
    %v2093 = vsel %vm1614, %v2091, %v2092
    %v2094 = vsel %vm1614, %v2090, %v2091
    %v2095 = vsel %vm1614, %v2089, %v2090
    %v2096 = vsel %vm1614, %v2088, %v2089
    %v2097 = vsel %vm1614, %v2087, %v2088
    %v2098 = vsel %vm1614, %v2086, %v2087
    %v2099 = vsel %vm1614, %v2085, %v2086
    %v2100 = vsel %vm1614, %v2084, %v2085
    %v2101 = vsel %vm1614, %v2083, %v2084
    %v2102 = vsel %vm1614, %v2082, %v2083
    %v2103 = vsel %vm1614, %v2081, %v2082
    %v2104 = vsel %vm1614, %v2080, %v2081
    %v2105 = vsel %vm1614, %v2079, %v2080
    %v2106 = vsel %vm1614, %v2078, %v2079
    %v2107 = vsel %vm1614, %v2077, %v2078
    %v2108 = vsel %vm1614, %v2092, %v2077
    %v2109 = vsel %vm1663, %v2108, 0.0
    %v2110 = vsel %vm1664, %v2107, 0.0
    %v2111 = vsel %vm1665, %v2106, 0.0
    %v2112 = vsel %vm1666, %v2105, 0.0
    %v2113 = vsel %vm1667, %v2104, 0.0
    %v2114 = vsel %vm1668, %v2103, 0.0
    %v2115 = vsel %vm1669, %v2102, 0.0
    %v2116 = vsel %vm1670, %v2101, 0.0
    %v2117 = vsel %vm1671, %v2100, 0.0
    %v2118 = vsel %vm1672, %v2099, 0.0
    %v2119 = vsel %vm1673, %v2098, 0.0
    %v2120 = vsel %vm1674, %v2097, 0.0
    %v2121 = vsel %vm1675, %v2096, 0.0
    %v2122 = vsel %vm1676, %v2095, 0.0
    %v2123 = vsel %vm1677, %v2094, 0.0
    %v2124 = vsel %vm1678, %v2093, 0.0
    %v2125 = vrot.slane %v2061, 6
    %v2126 = vrot.slane %v2062, 6
    %v2127 = vrot.slane %v2063, 6
    %v2128 = vrot.slane %v2064, 6
    %v2129 = vrot.slane %v2065, 6
    %v2130 = vrot.slane %v2066, 6
    %v2131 = vrot.slane %v2067, 6
    %v2132 = vrot.slane %v2068, 6
    %v2133 = vrot.slane %v2069, 6
    %v2134 = vrot.slane %v2070, 6
    %v2135 = vrot.slane %v2071, 6
    %v2136 = vrot.slane %v2072, 6
    %v2137 = vrot.slane %v2073, 6
    %v2138 = vrot.slane %v2074, 6
    %v2139 = vrot.slane %v2075, 6
    %v2140 = vrot.slane %v2076, 6
    %v2141 = vsel %vm447, %v2139, %v2140
    %v2142 = vsel %vm447, %v2138, %v2139
    %v2143 = vsel %vm447, %v2137, %v2138
    %v2144 = vsel %vm447, %v2136, %v2137
    %v2145 = vsel %vm447, %v2135, %v2136
    %v2146 = vsel %vm447, %v2134, %v2135
    %v2147 = vsel %vm447, %v2133, %v2134
    %v2148 = vsel %vm447, %v2132, %v2133
    %v2149 = vsel %vm447, %v2131, %v2132
    %v2150 = vsel %vm447, %v2130, %v2131
    %v2151 = vsel %vm447, %v2129, %v2130
    %v2152 = vsel %vm447, %v2128, %v2129
    %v2153 = vsel %vm447, %v2127, %v2128
    %v2154 = vsel %vm447, %v2126, %v2127
    %v2155 = vsel %vm447, %v2125, %v2126
    %v2156 = vsel %vm447, %v2140, %v2125
    %v2157 = vsel %vm496, %v2156, 0.0
    %v2158 = vsel %vm497, %v2155, 0.0
    %v2159 = vsel %vm498, %v2154, 0.0
    %v2160 = vsel %vm499, %v2153, 0.0
    %v2161 = vsel %vm500, %v2152, 0.0
    %v2162 = vsel %vm501, %v2151, 0.0
    %v2163 = vsel %vm502, %v2150, 0.0
    %v2164 = vsel %vm503, %v2149, 0.0
    %v2165 = vsel %vm504, %v2148, 0.0
    %v2166 = vsel %vm505, %v2147, 0.0
    %v2167 = vsel %vm506, %v2146, 0.0
    %v2168 = vsel %vm507, %v2145, 0.0
    %v2169 = vsel %vm508, %v2144, 0.0
    %v2170 = vsel %vm509, %v2143, 0.0
    %v2171 = vsel %vm510, %v2142, 0.0
    %v2172 = vsel %vm511, %v2141, 0.0
    %2189 = vrot.lane.b32.xlu0 %v2157, 64
    %v2190 = vpop.permute.xlu0 %2189
    %2191 = vrot.lane.b32.xlu0 %v2158, 64
    %v2192 = vpop.permute.xlu0 %2191
    %2193 = vrot.lane.b32.xlu0 %v2159, 64
    %v2194 = vpop.permute.xlu0 %2193
    %2195 = vrot.lane.b32.xlu0 %v2160, 64
    %v2196 = vpop.permute.xlu0 %2195
    %2197 = vrot.lane.b32.xlu0 %v2161, 64
    %v2198 = vpop.permute.xlu0 %2197
    %2199 = vrot.lane.b32.xlu0 %v2162, 64
    %v2200 = vpop.permute.xlu0 %2199
    %2201 = vrot.lane.b32.xlu0 %v2163, 64
    %v2202 = vpop.permute.xlu0 %2201
    %2203 = vrot.lane.b32.xlu0 %v2164, 64
    %v2204 = vpop.permute.xlu0 %2203
    %2205 = vrot.lane.b32.xlu0 %v2165, 64
    %v2206 = vpop.permute.xlu0 %2205
    %2207 = vrot.lane.b32.xlu0 %v2166, 64
    %v2208 = vpop.permute.xlu0 %2207
    %2209 = vrot.lane.b32.xlu0 %v2167, 64
    %v2210 = vpop.permute.xlu0 %2209
    %2211 = vrot.lane.b32.xlu0 %v2168, 64
    %v2212 = vpop.permute.xlu0 %2211
    %2213 = vrot.lane.b32.xlu0 %v2169, 64
    %v2214 = vpop.permute.xlu0 %2213
    %2215 = vrot.lane.b32.xlu0 %v2170, 64
    %v2216 = vpop.permute.xlu0 %2215
    %2217 = vrot.lane.b32.xlu0 %v2171, 64
    %v2218 = vpop.permute.xlu0 %2217
    %2219 = vrot.lane.b32.xlu0 %v2172, 64
    %v2220 = vpop.permute.xlu0 %2219
    %v2237 = vsel %vm770, %v2109, %v2190
    %v2238 = vsel %vm770, %v2110, %v2192
    %v2239 = vsel %vm770, %v2111, %v2194
    %v2240 = vsel %vm770, %v2112, %v2196
    %v2241 = vsel %vm770, %v2113, %v2198
    %v2242 = vsel %vm770, %v2114, %v2200
    %v2243 = vsel %vm770, %v2115, %v2202
    %v2244 = vsel %vm770, %v2116, %v2204
    %v2245 = vsel %vm770, %v2117, %v2206
    %v2246 = vsel %vm770, %v2118, %v2208
    %v2247 = vsel %vm770, %v2119, %v2210
    %v2248 = vsel %vm770, %v2120, %v2212
    %v2249 = vsel %vm770, %v2121, %v2214
    %v2250 = vsel %vm770, %v2122, %v2216
    %v2251 = vsel %vm770, %v2123, %v2218
    %v2252 = vsel %vm770, %v2124, %v2220
    %v2253 = vpack.c.bf16 %v2238, %v2237
    %v2254 = vpack.c.bf16 %v2062, %v2061
    %v2255 = vpack.c.bf16 %v2240, %v2239
    %v2256 = vpack.c.bf16 %v2064, %v2063
    %v2257 = vpack.c.bf16 %v2242, %v2241
    %v2258 = vpack.c.bf16 %v2066, %v2065
    %v2259 = vpack.c.bf16 %v2244, %v2243
    %v2260 = vpack.c.bf16 %v2068, %v2067
    %v2261 = vpack.c.bf16 %v2246, %v2245
    %v2262 = vpack.c.bf16 %v2070, %v2069
    %v2263 = vpack.c.bf16 %v2248, %v2247
    %v2264 = vpack.c.bf16 %v2072, %v2071
    %v2265 = vpack.c.bf16 %v2250, %v2249
    %v2266 = vpack.c.bf16 %v2074, %v2073
    %v2267 = vpack.c.bf16 %v2252, %v2251
    %v2268 = vpack.c.bf16 %v2076, %v2075
    %v2269 = vld [vmem:[%s7] sm:$0xf]
    %v2270 = vld [vmem:[%s7 + $0x4] sm:$0xf]
    %v2271 = vld [vmem:[%s7 + $0x8] sm:$0xf]
    %v2272 = vld [vmem:[%s7 + $0xc] sm:$0xf]
    %v2273 = vld [vmem:[%s7 + $0x10] sm:$0xf]
    %v2274 = vld [vmem:[%s7 + $0x14] sm:$0xf]
    %v2275 = vld [vmem:[%s7 + $0x18] sm:$0xf]
    %v2276 = vld [vmem:[%s7 + $0x1c] sm:$0xf]
    %v2277 = vld [vmem:[%s7 + $0x20] sm:$0xf]
    %v2278 = vld [vmem:[%s7 + $0x24] sm:$0xf]
    %v2279 = vld [vmem:[%s7 + $0x28] sm:$0xf]
    %v2280 = vld [vmem:[%s7 + $0x2c] sm:$0xf]
    %v2281 = vld [vmem:[%s7 + $0x30] sm:$0xf]
    %v2282 = vld [vmem:[%s7 + $0x34] sm:$0xf]
    %v2283 = vld [vmem:[%s7 + $0x38] sm:$0xf]
    %v2284 = vld [vmem:[%s7 + $0x3c] sm:$0xf]
    %v2285 = vld [vmem:[%s7 + $0x40] sm:$0xf]
    %v2286 = vld [vmem:[%s7 + $0x44] sm:$0xf]
    %v2287 = vld [vmem:[%s7 + $0x48] sm:$0xf]
    %v2288 = vld [vmem:[%s7 + $0x4c] sm:$0xf]
    %v2289 = vld [vmem:[%s7 + $0x50] sm:$0xf]
    %v2290 = vld [vmem:[%s7 + $0x54] sm:$0xf]
    %v2291 = vld [vmem:[%s7 + $0x58] sm:$0xf]
    %v2292 = vld [vmem:[%s7 + $0x5c] sm:$0xf]
    %v2293 = vld [vmem:[%s2 + $0x5] sm:$0x1]
    %v2294 = vlaneseq
    %v2295 = vshrl.u32 %v2294, 7
    %v2296 = vsub.s32 0, %v2295
    %v2297 = vrot.slane %v2293, %v2296
    %v2322 = vunpack.c.l.b16 %v2269
    %v2323 = vunpack.c.l.b16 %v2270
    %v2324 = vunpack.c.l.b16 %v2271
    %v2325 = vunpack.c.l.b16 %v2272
    %v2326 = vunpack.c.l.b16 %v2273
    %v2327 = vunpack.c.l.b16 %v2274
    %v2328 = vunpack.c.l.b16 %v2275
    %v2329 = vunpack.c.l.b16 %v2276
    %v2330 = vunpack.c.l.b16 %v2277
    %v2331 = vunpack.c.l.b16 %v2278
    %v2332 = vunpack.c.l.b16 %v2279
    %v2333 = vunpack.c.l.b16 %v2280
    %v2334 = vunpack.c.l.b16 %v2281
    %v2335 = vunpack.c.l.b16 %v2282
    %v2336 = vunpack.c.l.b16 %v2283
    %v2337 = vunpack.c.l.b16 %v2284
    %v2338 = vunpack.c.l.b16 %v2285
    %v2339 = vunpack.c.l.b16 %v2286
    %v2340 = vunpack.c.l.b16 %v2287
    %v2341 = vunpack.c.l.b16 %v2288
    %v2342 = vunpack.c.l.b16 %v2289
    %v2343 = vunpack.c.l.b16 %v2290
    %v2344 = vunpack.c.l.b16 %v2291
    %v2345 = vunpack.c.l.b16 %v2292
    %v2346 = vpack.c.b16 %v2323, %v2322
    %v2347 = vpack.c.b16 %v2325, %v2324
    %v2348 = vpack.c.b16 %v2327, %v2326
    %v2349 = vpack.c.b16 %v2329, %v2328
    %v2350 = vpack.c.b16 %v2331, %v2330
    %v2351 = vpack.c.b16 %v2333, %v2332
    %v2352 = vpack.c.b16 %v2335, %v2334
    %v2353 = vpack.c.b16 %v2337, %v2336
    %v2354 = vpack.c.b16 %v2339, %v2338
    %v2355 = vpack.c.b16 %v2341, %v2340
    %v2356 = vpack.c.b16 %v2343, %v2342
    %v2357 = vpack.c.b16 %v2345, %v2344
    %v2371 = vsel %vm770, %v2254, 0
    %v2374 = vsel %vm770, %v2256, 0
    %v2377 = vsel %vm770, %v2258, 0
    %v2380 = vsel %vm770, %v2260, 0
    %v2383 = vsel %vm770, %v2262, 0
    %v2386 = vsel %vm770, %v2264, 0
    %v2389 = vsel %vm770, %v2266, 0
    %v2392 = vsel %vm770, %v2268, 0
    %2394 = vmatprep.subr.bf16.mxu0 0
    %2395 = vmatpush1.bf16.msra.mxu0 %v2353
    %2396 = vmatprep.subr.bf16.mxu0 0
    %2397 = vmatpush1.bf16.msra.mxu0 %v2352
    %2398 = vmatprep.subr.bf16.mxu0 0
    %2399 = vmatpush1.bf16.msra.mxu0 %v2351
    %2400 = vmatprep.subr.bf16.mxu0 0
    %2401 = vmatpush1.bf16.msra.mxu0 %v2350
    %2402 = vmatprep.subr.bf16.mxu0 0
    %2403 = vmatpush1.bf16.msra.mxu0 %v2349
    %2404 = vmatprep.subr.bf16.mxu0 0
    %2405 = vmatpush1.bf16.msra.mxu0 %v2348
    %2406 = vmatprep.subr.bf16.mxu0 0
    %2407 = vmatpush1.bf16.msra.mxu0 %v2347
    %2408 = vmatprep.subr.bf16.mxu0 0
    %2409 = vmatpush1.bf16.msra.mxu0 %v2346
    %2410 = vmatprep.subr.bf16.mxu0 0
    %2411 = vmatpush2.bf16.msra.mxu0 0
    %2412 = vmatprep.subr.bf16.mxu0 0
    %2413 = vmatpush2.bf16.msra.mxu0 0
    %2414 = vmatprep.subr.bf16.mxu0 0
    %2415 = vmatpush2.bf16.msra.mxu0 0
    %2416 = vmatprep.subr.bf16.mxu0 0
    %2417 = vmatpush2.bf16.msra.mxu0 0
    %2418 = vmatprep.subr.bf16.mxu0 0
    %2419 = vmatpush2.bf16.msra.mxu0 %v2357
    %2420 = vmatprep.subr.bf16.mxu0 0
    %2421 = vmatpush2.bf16.msra.mxu0 %v2356
    %2422 = vmatprep.subr.bf16.mxu0 0
    %2423 = vmatpush2.bf16.msra.mxu0 %v2355
    %2424 = vmatprep.subr.bf16.mxu0 0
    %2425 = vmatpush2.bf16.msra.mxu0 %v2354
    %2426 = vmatprep.mubr.bf16.mxu0 %v2371
    %2427 = vmatmul.mubr.bf16.gmra.mxu0 %v2253
    %v2428 = vpop.f32.mrf.mxu0
    %v2429 = vadd.f32 %v2297, %v2428
    %v2430 = vpop.f32.mrf.mxu0
    %v2431 = vpop.f32.mrf.mxu0
    %v2432 = vadd.f32 %v2297, %v2431
    %v2433 = vpop.f32.mrf.mxu0
    %2434 = vmatprep.mubr.bf16.mxu0 %v2374
    %2435 = vmatmul.mubr.bf16.gmra.mxu0 %v2255
    %v2436 = vpop.f32.mrf.mxu0
    %v2437 = vadd.f32 %v2297, %v2436
    %v2438 = vpop.f32.mrf.mxu0
    %v2439 = vpop.f32.mrf.mxu0
    %v2440 = vadd.f32 %v2297, %v2439
    %v2441 = vpop.f32.mrf.mxu0
    %2442 = vmatprep.mubr.bf16.mxu0 %v2377
    %2443 = vmatmul.mubr.bf16.gmra.mxu0 %v2257
    %v2444 = vpop.f32.mrf.mxu0
    %v2445 = vadd.f32 %v2297, %v2444
    %v2446 = vpop.f32.mrf.mxu0
    %v2447 = vpop.f32.mrf.mxu0
    %v2448 = vadd.f32 %v2297, %v2447
    %v2449 = vpop.f32.mrf.mxu0
    %2450 = vmatprep.mubr.bf16.mxu0 %v2380
    %2451 = vmatmul.mubr.bf16.gmra.mxu0 %v2259
    %v2452 = vpop.f32.mrf.mxu0
    %v2453 = vadd.f32 %v2297, %v2452
    %v2454 = vpop.f32.mrf.mxu0
    %v2455 = vpop.f32.mrf.mxu0
    %v2456 = vadd.f32 %v2297, %v2455
    %v2457 = vpop.f32.mrf.mxu0
    %2458 = vmatprep.mubr.bf16.mxu0 %v2383
    %2459 = vmatmul.mubr.bf16.gmra.mxu0 %v2261
    %v2460 = vpop.f32.mrf.mxu0
    %v2461 = vadd.f32 %v2297, %v2460
    %v2462 = vpop.f32.mrf.mxu0
    %v2463 = vpop.f32.mrf.mxu0
    %v2464 = vadd.f32 %v2297, %v2463
    %v2465 = vpop.f32.mrf.mxu0
    %2466 = vmatprep.mubr.bf16.mxu0 %v2386
    %2467 = vmatmul.mubr.bf16.gmra.mxu0 %v2263
    %v2468 = vpop.f32.mrf.mxu0
    %v2469 = vadd.f32 %v2297, %v2468
    %v2470 = vpop.f32.mrf.mxu0
    %v2471 = vpop.f32.mrf.mxu0
    %v2472 = vadd.f32 %v2297, %v2471
    %v2473 = vpop.f32.mrf.mxu0
    %2474 = vmatprep.mubr.bf16.mxu0 %v2389
    %2475 = vmatmul.mubr.bf16.gmra.mxu0 %v2265
    %v2476 = vpop.f32.mrf.mxu0
    %v2477 = vadd.f32 %v2297, %v2476
    %v2478 = vpop.f32.mrf.mxu0
    %v2479 = vpop.f32.mrf.mxu0
    %v2480 = vadd.f32 %v2297, %v2479
    %v2481 = vpop.f32.mrf.mxu0
    %2482 = vmatprep.mubr.bf16.mxu0 %v2392
    %2483 = vmatmul.mubr.bf16.gmra.mxu0 %v2267
    %v2484 = vpop.f32.mrf.mxu0
    %v2485 = vadd.f32 %v2297, %v2484
    %v2486 = vpop.f32.mrf.mxu0
    %v2487 = vpop.f32.mrf.mxu0
    %v2488 = vadd.f32 %v2297, %v2487
    %v2489 = vpop.f32.mrf.mxu0
    %2490 = vdwg.mxu0
    %v2491 = vmax.f32 %v2429, 0.0
    %v2492 = vmax.f32 %v2432, 0.0
    %v2493 = vmax.f32 %v2437, 0.0
    %v2494 = vmax.f32 %v2440, 0.0
    %v2495 = vmax.f32 %v2445, 0.0
    %v2496 = vmax.f32 %v2448, 0.0
    %v2497 = vmax.f32 %v2453, 0.0
    %v2498 = vmax.f32 %v2456, 0.0
    %v2499 = vmax.f32 %v2461, 0.0
    %v2500 = vmax.f32 %v2464, 0.0
    %v2501 = vmax.f32 %v2469, 0.0
    %v2502 = vmax.f32 %v2472, 0.0
    %v2503 = vmax.f32 %v2477, 0.0
    %v2504 = vmax.f32 %v2480, 0.0
    %v2505 = vmax.f32 %v2485, 0.0
    %v2506 = vmax.f32 %v2488, 0.0
    %v2507 = vadd.f32 %v2491, %v1582
    %v2508 = vadd.f32 %v2492, %v1583
    %v2509 = vadd.f32 %v2493, %v1584
    %v2510 = vadd.f32 %v2494, %v1585
    %v2511 = vadd.f32 %v2495, %v1586
    %v2512 = vadd.f32 %v2496, %v1587
    %v2513 = vadd.f32 %v2497, %v1588
    %v2514 = vadd.f32 %v2498, %v1589
    %v2515 = vadd.f32 %v2499, %v1590
    %v2516 = vadd.f32 %v2500, %v1591
    %v2517 = vadd.f32 %v2501, %v1592
    %v2518 = vadd.f32 %v2502, %v1593
    %v2519 = vadd.f32 %v2503, %v1594
    %v2520 = vadd.f32 %v2504, %v1595
    %v2521 = vadd.f32 %v2505, %v1596
    %v2522 = vadd.f32 %v2506, %v1597
    %v2523 = vmax.f32 %v2507, 0.0
    %v2524 = vmax.f32 %v2508, 0.0
    %v2525 = vmax.f32 %v2509, 0.0
    %v2526 = vmax.f32 %v2510, 0.0
    %v2527 = vmax.f32 %v2511, 0.0
    %v2528 = vmax.f32 %v2512, 0.0
    %v2529 = vmax.f32 %v2513, 0.0
    %v2530 = vmax.f32 %v2514, 0.0
    %v2531 = vmax.f32 %v2515, 0.0
    %v2532 = vmax.f32 %v2516, 0.0
    %v2533 = vmax.f32 %v2517, 0.0
    %v2534 = vmax.f32 %v2518, 0.0
    %v2535 = vmax.f32 %v2519, 0.0
    %v2536 = vmax.f32 %v2520, 0.0
    %v2537 = vmax.f32 %v2521, 0.0
    %v2538 = vmax.f32 %v2522, 0.0
    %v2539 = vpack.c.bf16 %v2524, %v2523
    %v2540 = vpack.c.bf16 %v2526, %v2525
    %v2541 = vpack.c.bf16 %v2528, %v2527
    %v2542 = vpack.c.bf16 %v2530, %v2529
    %v2543 = vpack.c.bf16 %v2532, %v2531
    %v2544 = vpack.c.bf16 %v2534, %v2533
    %v2545 = vpack.c.bf16 %v2536, %v2535
    %v2546 = vpack.c.bf16 %v2538, %v2537
    %v2547 = vld [vmem:[%s8] sm:$0xf]
    %v2548 = vld [vmem:[%s8 + $0x4] sm:$0xf]
    %v2549 = vld [vmem:[%s8 + $0x8] sm:$0xf]
    %v2550 = vld [vmem:[%s8 + $0xc] sm:$0xf]
    %v2551 = vld [vmem:[%s8 + $0x10] sm:$0xf]
    %v2552 = vld [vmem:[%s8 + $0x14] sm:$0xf]
    %v2553 = vld [vmem:[%s8 + $0x18] sm:$0xf]
    %v2554 = vld [vmem:[%s8 + $0x1c] sm:$0xf]
    %v2555 = vld [vmem:[%s2 + $0x6] sm:$0x1]
    %v2556 = vlaneseq
    %v2557 = vshrl.u32 %v2556, 7
    %v2558 = vsub.s32 0, %v2557
    %v2559 = vrot.slane %v2555, %v2558
    %v2568 = vunpack.c.l.b16 %v2547
    %v2569 = vunpack.c.l.b16 %v2548
    %v2570 = vunpack.c.l.b16 %v2549
    %v2571 = vunpack.c.l.b16 %v2550
    %v2572 = vunpack.c.l.b16 %v2551
    %v2573 = vunpack.c.l.b16 %v2552
    %v2574 = vunpack.c.l.b16 %v2553
    %v2575 = vunpack.c.l.b16 %v2554
    %v2576 = vpack.c.b16 %v2569, %v2568
    %v2577 = vpack.c.b16 %v2571, %v2570
    %v2578 = vpack.c.b16 %v2573, %v2572
    %v2579 = vpack.c.b16 %v2575, %v2574
    %v2585 = vsel %vm770, %v2539, 0
    %v2588 = vsel %vm770, %v2540, 0
    %v2591 = vsel %vm770, %v2541, 0
    %v2594 = vsel %vm770, %v2542, 0
    %v2597 = vsel %vm770, %v2543, 0
    %v2600 = vsel %vm770, %v2544, 0
    %v2603 = vsel %vm770, %v2545, 0
    %v2606 = vsel %vm770, %v2546, 0
    %2608 = vmatprep.subr.bf16.mxu0 0
    %2609 = vmatpush1.bf16.msra.mxu0 0
    %2610 = vmatprep.subr.bf16.mxu0 0
    %2611 = vmatpush1.bf16.msra.mxu0 0
    %2612 = vmatprep.subr.bf16.mxu0 0
    %2613 = vmatpush1.bf16.msra.mxu0 0
    %2614 = vmatprep.subr.bf16.mxu0 0
    %2615 = vmatpush1.bf16.msra.mxu0 0
    %2616 = vmatprep.subr.bf16.mxu0 0
    %2617 = vmatpush1.bf16.msra.mxu0 %v2579
    %2618 = vmatprep.subr.bf16.mxu0 0
    %2619 = vmatpush1.bf16.msra.mxu0 %v2578
    %2620 = vmatprep.subr.bf16.mxu0 0
    %2621 = vmatpush1.bf16.msra.mxu0 %v2577
    %2622 = vmatprep.subr.bf16.mxu0 0
    %2623 = vmatpush1.bf16.msra.mxu0 %v2576
    %2624 = vmatprep.subr.bf16.mxu0 0
    %2625 = vmatpush2.bf16.msra.mxu0 0
    %2626 = vmatprep.subr.bf16.mxu0 0
    %2627 = vmatpush2.bf16.msra.mxu0 0
    %2628 = vmatprep.subr.bf16.mxu0 0
    %2629 = vmatpush2.bf16.msra.mxu0 0
    %2630 = vmatprep.subr.bf16.mxu0 0
    %2631 = vmatpush2.bf16.msra.mxu0 0
    %2632 = vmatprep.subr.bf16.mxu0 0
    %2633 = vmatpush2.bf16.msra.mxu0 0
    %2634 = vmatprep.subr.bf16.mxu0 0
    %2635 = vmatpush2.bf16.msra.mxu0 0
    %2636 = vmatprep.subr.bf16.mxu0 0
    %2637 = vmatpush2.bf16.msra.mxu0 0
    %2638 = vmatprep.subr.bf16.mxu0 0
    %2639 = vmatpush2.bf16.msra.mxu0 0
    %2640 = vmatprep.mubr.bf16.mxu0 0
    %2641 = vmatmul.mubr.bf16.gmra.mxu0 %v2585
    %v2642 = vpop.f32.mrf.mxu0
    %v2643 = vadd.f32 %v2559, %v2642
    %v2644 = vpop.f32.mrf.mxu0
    %v2645 = vpop.f32.mrf.mxu0
    %v2646 = vadd.f32 %v2559, %v2645
    %v2647 = vpop.f32.mrf.mxu0
    %2648 = vmatprep.mubr.bf16.mxu0 0
    %2649 = vmatmul.mubr.bf16.gmra.mxu0 %v2588
    %v2650 = vpop.f32.mrf.mxu0
    %v2651 = vadd.f32 %v2559, %v2650
    %v2652 = vpop.f32.mrf.mxu0
    %v2653 = vpop.f32.mrf.mxu0
    %v2654 = vadd.f32 %v2559, %v2653
    %v2655 = vpop.f32.mrf.mxu0
    %2656 = vmatprep.mubr.bf16.mxu0 0
    %2657 = vmatmul.mubr.bf16.gmra.mxu0 %v2591
    %v2658 = vpop.f32.mrf.mxu0
    %v2659 = vadd.f32 %v2559, %v2658
    %v2660 = vpop.f32.mrf.mxu0
    %v2661 = vpop.f32.mrf.mxu0
    %v2662 = vadd.f32 %v2559, %v2661
    %v2663 = vpop.f32.mrf.mxu0
    %2664 = vmatprep.mubr.bf16.mxu0 0
    %2665 = vmatmul.mubr.bf16.gmra.mxu0 %v2594
    %v2666 = vpop.f32.mrf.mxu0
    %v2667 = vadd.f32 %v2559, %v2666
    %v2668 = vpop.f32.mrf.mxu0
    %v2669 = vpop.f32.mrf.mxu0
    %v2670 = vadd.f32 %v2559, %v2669
    %v2671 = vpop.f32.mrf.mxu0
    %2672 = vmatprep.mubr.bf16.mxu0 0
    %2673 = vmatmul.mubr.bf16.gmra.mxu0 %v2597
    %v2674 = vpop.f32.mrf.mxu0
    %v2675 = vadd.f32 %v2559, %v2674
    %v2676 = vpop.f32.mrf.mxu0
    %v2677 = vpop.f32.mrf.mxu0
    %v2678 = vadd.f32 %v2559, %v2677
    %v2679 = vpop.f32.mrf.mxu0
    %2680 = vmatprep.mubr.bf16.mxu0 0
    %2681 = vmatmul.mubr.bf16.gmra.mxu0 %v2600
    %v2682 = vpop.f32.mrf.mxu0
    %v2683 = vadd.f32 %v2559, %v2682
    %v2684 = vpop.f32.mrf.mxu0
    %v2685 = vpop.f32.mrf.mxu0
    %v2686 = vadd.f32 %v2559, %v2685
    %v2687 = vpop.f32.mrf.mxu0
    %2688 = vmatprep.mubr.bf16.mxu0 0
    %2689 = vmatmul.mubr.bf16.gmra.mxu0 %v2603
    %v2690 = vpop.f32.mrf.mxu0
    %v2691 = vadd.f32 %v2559, %v2690
    %v2692 = vpop.f32.mrf.mxu0
    %v2693 = vpop.f32.mrf.mxu0
    %v2694 = vadd.f32 %v2559, %v2693
    %v2695 = vpop.f32.mrf.mxu0
    %2696 = vmatprep.mubr.bf16.mxu0 0
    %2697 = vmatmul.mubr.bf16.gmra.mxu0 %v2606
    %v2698 = vpop.f32.mrf.mxu0
    %v2699 = vadd.f32 %v2559, %v2698
    %v2700 = vpop.f32.mrf.mxu0
    %v2701 = vpop.f32.mrf.mxu0
    %v2702 = vadd.f32 %v2559, %v2701
    %v2703 = vpop.f32.mrf.mxu0
    %2704 = vdwg.mxu0
    %2705 = vst [vmem:[#allocation2] sm:$0xff] %v2643
    %2706 = vst [vmem:[#allocation2 + $0x8] sm:$0xff] %v2646
    %2707 = vst [vmem:[#allocation2 + $0x10] sm:$0xff] %v2651
    %2708 = vst [vmem:[#allocation2 + $0x18] sm:$0xff] %v2654
    %2709 = vst [vmem:[#allocation2 + $0x20] sm:$0xff] %v2659
    %2710 = vst [vmem:[#allocation2 + $0x28] sm:$0xff] %v2662
    %2711 = vst [vmem:[#allocation2 + $0x30] sm:$0xff] %v2667
    %2712 = vst [vmem:[#allocation2 + $0x38] sm:$0xff] %v2670
    %2713 = vst [vmem:[#allocation2 + $0x40] sm:$0xff] %v2675
    %2714 = vst [vmem:[#allocation2 + $0x48] sm:$0xff] %v2678
    %2715 = vst [vmem:[#allocation2 + $0x50] sm:$0xff] %v2683
    %2716 = vst [vmem:[#allocation2 + $0x58] sm:$0xff] %v2686
    %2717 = vst [vmem:[#allocation2 + $0x60] sm:$0xff] %v2691
    %2718 = vst [vmem:[#allocation2 + $0x68] sm:$0xff] %v2694
    %2719 = vst [vmem:[#allocation2 + $0x70] sm:$0xff] %v2699
    %2720 = vst [vmem:[#allocation2 + $0x78] sm:$0xff] %v2702
    // Predicated region
    $region38: #{tpu_custom_call.1} parent=1 // pred_check
      _
    $region39: #{tpu_custom_call.1} parent=1 // pred_check_branch
      %2722 = sbr.rel (0) target = $region41
    $region40: #{tpu_custom_call.1} parent=1 // pred_region
      %s2724 = ssub.s32 2048, 2048
      %2725 = vsyncadd [#allocation3], %s2724
      %s2726 = sshll.u32 [#allocation2], 4
      %s2727 = int_to_ptr.vmem [resolvable:$true] %s2726
      %2732 = dma.vmem_to_hbm [thread:$0]  %s2727, 2048, %s9, [#allocation3], 128, 128, 8
    $region41: #{tpu_custom_call.1} parent=1 // pred_fallthru
      _
    // Predicated region
    $region42: #{tpu_custom_call.1} parent=1 // pred_check
      _
    $region43: #{tpu_custom_call.1} parent=1 // pred_check_branch
      %2734 = sbr.rel (0) target = $region45
    $region44: #{tpu_custom_call.1} parent=1 // pred_region
      %2735 = dma.done [#allocation3], 2048
    $region45: #{tpu_custom_call.1} parent=1 // pred_fallthru
      _
    %2736 = vsyncpa [#allocation3], 1

</llo_original>
